<compile_context>
chip_gen: v5e
topology: v5e:2x2
jax: 0.10.0
libtpu: 0.0.40
codegen_flags: <defaults>
</compile_context>

<pallas_src>
import functools

import jax
import jax.numpy as jnp
from jax.experimental import pallas as pl
from jax.experimental.pallas import tpu as pltpu


def _round_up(x, m):
    return -(-x // m) * m


def _tpu_vmem_capacity_bytes():
    """Physical VMEM per TensorCore (v5e/v6e: 128 MiB, v7x: 64 MiB)."""
    try:
        info = pltpu.get_tpu_info()
        for attr in ("vmem_capacity_bytes", "vmem_bytes", "vmem_size_bytes"):
            v = getattr(info, attr, None)
            if v:
                return int(v)
    except Exception:
        pass
    return 64 << 20  # conservative (v7x-sized) fallback


# ----------------------------------------------------------------------------
# Kernel factory
# ----------------------------------------------------------------------------
def make_discriminator_kernel(edges, layer_units, feat_dim, tb, n_nodes,
                              out_dim, out_lanes, compute_dtype):
    """Builds the per-batch-tile kernel.

    Ref order:
      adj (TB, E-1, N, N), feats (TB, N, F),
      layer 0:  wf0 (F, Wp0), b0 (1, Wp0)
      layer l>0: wh_l (U_{l-1}, Wpl), wf_l (F, Wpl), b_l (1, Wpl)
      agg_w, agg_b, lin_w, lin_b, out_w, out_b, o_ref (TB, out_lanes)
    """
    e1 = edges - 1
    tbn = tb * n_nodes

    def kernel(*refs):
        adj_tile = refs[0][...]                           # (tb, e1, N, N)
        # Lane-fold the adjacency ONCE per grid step into the fused layout
        # adj_t[b, i, e*N + j] = adj[b, e, i, j]  (edge-major lanes), bf16.
        adj_t = jnp.concatenate(
            [adj_tile[:, e] for e in range(e1)], axis=-1
        ).astype(compute_dtype)                           # (tb, N, e1*N)

        feats2d = refs[1][...].reshape(tbn, feat_dim).astype(compute_dtype)
        idx = 2

        hidden2d = None
        for layer, u in enumerate(layer_units):
            if layer == 0:
                wf = refs[idx][...]
                b = refs[idx + 1][...]
                idx += 2
                pre = jnp.dot(feats2d, wf,
                              preferred_element_type=jnp.float32) + b
            else:
                wh = refs[idx][...]
                wf = refs[idx + 1][...]
                b = refs[idx + 2][...]
                idx += 3
                # cat(hidden, feats) @ W  ==  hidden @ W_h + feats @ W_f
                pre = (jnp.dot(hidden2d, wh,
                               preferred_element_type=jnp.float32)
                       + jnp.dot(feats2d, wf,
                                 preferred_element_type=jnp.float32)
                       + b)

            pre3 = pre.reshape(tb, n_nodes, pre.shape[-1])
            self_term = pre3[..., e1 * u:edges * u]       # "linear2" (tb, N, U)
            # Edge-major row fold: res[b, e*N + j, :] = pre3[b, j, e*U:(e+1)*U]
            res = jnp.concatenate(
                [pre3[..., e * u:(e + 1) * u] for e in range(e1)], axis=1
            ).astype(compute_dtype)                       # (tb, e1*N, U)
            # Single batched MXU contraction over the fused (e1*N) axis.
            msg = jax.lax.dot_general(
                adj_t, res,
                dimension_numbers=(((2,), (1,)), ((0,), (0,))),
                preferred_element_type=jnp.float32)       # (tb, N, U)
            hidden2d = jnp.tanh(self_term + msg).reshape(tbn, u).astype(
                compute_dtype)                            # dropout == identity

        agg_w = refs[idx][...]
        agg_b = refs[idx + 1][...]
        lin_w = refs[idx + 2][...]
        lin_b = refs[idx + 3][...]
        out_w = refs[idx + 4][...]
        out_b = refs[idx + 5][...]
        o_ref = refs[idx + 6]

        # GraphAggregation: sigmoid(Wx) * tanh(Wx), sum over nodes, tanh.
        lin = (jnp.dot(hidden2d, agg_w, preferred_element_type=jnp.float32)
               + agg_b).reshape(tb, n_nodes, agg_w.shape[-1])
        gated = jax.nn.sigmoid(lin) * jnp.tanh(lin)
        agg = jnp.tanh(jnp.sum(gated, axis=1)).astype(compute_dtype)

        # MLP head.
        h = jnp.tanh(jnp.dot(agg, lin_w, preferred_element_type=jnp.float32)
                     + lin_b).astype(compute_dtype)
        out = jnp.dot(h, out_w, preferred_element_type=jnp.float32) + out_b

        # Lane-dense 2-D output slab (tb, 128); wrapper slices [:, :out_dim].
        pad = jnp.zeros((tb, out_lanes - out_dim), jnp.float32)
        o_ref[...] = jnp.concatenate([out.astype(jnp.float32), pad], axis=-1)

    return kernel


# ----------------------------------------------------------------------------
# Weight packing (done once in the wrapper, outside the kernel)
# ----------------------------------------------------------------------------
def pack_conv_params(conv_params, features_dim, compute_dtype):
    """Fuse the (edges-1) edge linears + the self linear into one matmul and
    zero-pad the packed lane width up to a multiple of 128.

    Layer 0      -> (W_feats (F, Wp), b (1, Wp))
    Layer l > 0  -> (W_hidden (U_prev, Wp), W_feats (F, Wp), b (1, Wp))
    Lane order: [edge_0 | ... | edge_{E-2} | self | zero-pad].
    Padded lanes are never read by the kernel.
    """
    packed = []
    for layer, (w1, b1, w2, b2) in enumerate(conv_params):
        e1 = w1.shape[0]
        w_cat = jnp.concatenate([w1[e] for e in range(e1)] + [w2], axis=1)
        b_cat = jnp.concatenate([b1[e] for e in range(e1)] + [b2], axis=1)
        width = w_cat.shape[1]
        wp = _round_up(width, 128)
        if wp != width:
            w_cat = jnp.pad(w_cat, ((0, 0), (0, wp - width)))
            b_cat = jnp.pad(b_cat, ((0, 0), (0, wp - width)))
        w_cat = w_cat.astype(compute_dtype)
        b_cat = b_cat.astype(jnp.float32)
        if layer == 0:
            packed.append((w_cat, b_cat))
        else:
            u_prev = w2.shape[0] - features_dim   # cat order is (hidden, feats)
            packed.append((w_cat[:u_prev], w_cat[u_prev:], b_cat))
    return packed


def _const_spec(arr):
    nd = arr.ndim
    return pl.BlockSpec(arr.shape, lambda i, _nd=nd: (0,) * _nd)


# ----------------------------------------------------------------------------
# Wrapper
# ----------------------------------------------------------------------------
@functools.partial(jax.jit,
                   static_argnames=("edges", "batch_tile", "compute_dtype"))
def discriminator_forward(adj, feats, conv_params, agg_params, lin_params,
                          out_params, *, edges, batch_tile=None,
                          compute_dtype=jnp.bfloat16):
    B, E, N, _ = adj.shape
    F = feats.shape[-1]
    assert E == edges and edges >= 2
    e1 = edges - 1
    out_dim = out_params[0].shape[1]
    layer_units = tuple(int(cp[3].shape[-1]) for cp in conv_params)

    # ---- weight packing (tiny; traced once) --------------------------------
    packed = pack_conv_params(conv_params, F, compute_dtype)
    flat = []
    for p in packed:
        flat.extend(p)
    flat += [agg_params[0].astype(compute_dtype),
             agg_params[1].astype(jnp.float32),
             lin_params[0].astype(compute_dtype),
             lin_params[1].astype(jnp.float32),
             out_params[0].astype(compute_dtype),
             out_params[1].astype(jnp.float32)]

    # ---- generation-aware VMEM budget (PADDED bytes) ------------------------
    phys_vmem = _tpu_vmem_capacity_bytes()
    # Scoped limit ~3/4 of physical: v7x -> 48 MiB of 64, v5e/v6e -> 96 of 128.
    vmem_limit = int(min(max(phys_vmem * 3 // 4, 32 << 20), 112 << 20))
    tile_budget = vmem_limit // 6        # per (adj+feats) tile; x2 double buf

    # VMEM stores (8,128)-padded tiles: an f32 (N,N)=(8,8) slab occupies
    # (8,128) words, i.e. 16x the logical bytes for small graphs.
    sub_a = max(8, 32 // adj.dtype.itemsize)
    sub_f = max(8, 32 // feats.dtype.itemsize)
    per_item = (e1 * _round_up(N, sub_a) * _round_up(N, 128) * adj.dtype.itemsize
                + _round_up(N, sub_f) * _round_up(F, 128) * feats.dtype.itemsize)

    if batch_tile is None:
        tb = max(1, min(B, tile_budget // max(per_item, 1)))
        if B >= 16:  # keep >= 2 grid steps so both v7x TensorCores get work
            tb = min(tb, _round_up(int(pl.cdiv(B, 2)), 8))
    else:
        tb = max(1, min(int(batch_tile), B))
    # (8,128) legality of the 2-D lane-dense output block: rows % 8 == 0
    # unless a single block covers the whole (padded) batch.
    if tb < B and tb % 8 != 0:
        tb = min(B, max(8, (tb // 8) * 8))
    steps = int(pl.cdiv(B, tb))
    b_pad = steps * tb

    # ---- batch remainder: zero-pad instead of shrinking the tile ------------
    if b_pad != B:
        adj = jnp.pad(adj, ((0, b_pad - B),) + ((0, 0),) * 3)
        feats = jnp.pad(feats, ((0, b_pad - B), (0, 0), (0, 0)))

    OUT_LANES = 128
    kernel = make_discriminator_kernel(edges, layer_units, F, tb, N,
                                       out_dim, OUT_LANES, compute_dtype)

    # The last (unused) edge-type is never DMA'd: the adjacency BlockSpec only
    # covers the first (edges-1) slices of the edge axis.
    in_specs = [
        pl.BlockSpec((tb, e1, N, N), lambda i: (i, 0, 0, 0)),
        pl.BlockSpec((tb, N, F), lambda i: (i, 0, 0)),
    ] + [_const_spec(w) for w in flat]
    out_specs = pl.BlockSpec((tb, OUT_LANES), lambda i: (i, 0))

    # ---- advisory cost estimate ---------------------------------------------
    flops = 0
    transcend = 0
    for (w1, b1, w2, b2) in conv_params:
        f_in, u = w2.shape
        flops += 2 * b_pad * N * f_in * (edges * u)      # fused edge+self linears
        flops += 2 * b_pad * N * (e1 * N) * u            # fused message passing
        transcend += b_pad * N * u
    agg_units = agg_params[0].shape[1]
    hid = layer_units[-1]
    flops += 2 * b_pad * N * hid * agg_units
    transcend += 3 * b_pad * N * agg_units + b_pad * agg_units
    u0 = lin_params[0].shape[1]
    flops += 2 * b_pad * (agg_units * u0 + u0 * out_dim)
    transcend += b_pad * u0
    bytes_accessed = (b_pad * e1 * N * N * adj.dtype.itemsize
                      + b_pad * N * F * feats.dtype.itemsize
                      + sum(int(w.size) * w.dtype.itemsize for w in flat)
                      + b_pad * OUT_LANES * 4)

    padded_out = pl.pallas_call(
        kernel,
        out_shape=jax.ShapeDtypeStruct((b_pad, OUT_LANES), jnp.float32),
        grid=(steps,),
        in_specs=in_specs,
        out_specs=out_specs,
        compiler_params=pltpu.CompilerParams(
            dimension_semantics=("parallel",),
            vmem_limit_bytes=vmem_limit),
        cost_estimate=pl.CostEstimate(
            flops=int(flops), transcendentals=int(transcend),
            bytes_accessed=int(bytes_accessed)),
    )(adj, feats, *flat)

    return padded_out[:B, :out_dim]


# ----------------------------------------------------------------------------
# Deterministic parameter init (mimics nn.Linear's uniform(-1/sqrt(fan_in), ·))
# ----------------------------------------------------------------------------
def init_linear(key, in_dim, out_dim):
    k1, k2 = jax.random.split(key)
    bound = 1.0 / (in_dim ** 0.5)
    w = jax.random.uniform(k1, (in_dim, out_dim), jnp.float32, -bound, bound)
    b = jax.random.uniform(k2, (1, out_dim), jnp.float32, -bound, bound)
    return w, b


def init_discriminator(key, gconv_units, units, features_dim, edges):
    conv_units = gconv_units[0]          # e.g. [16, 32]
    agg_units = gconv_units[-1]          # int
    hidden_dim = conv_units[-1]

    conv_params = []
    in_dim = features_dim
    for u in conv_units:
        w1s, b1s = [], []
        for _ in range(edges - 1):
            key, sub = jax.random.split(key)
            w, b = init_linear(sub, in_dim, u)
            w1s.append(w)
            b1s.append(b)
        key, sub = jax.random.split(key)
        w2, b2 = init_linear(sub, in_dim, u)
        conv_params.append((jnp.stack(w1s, 0), jnp.stack(b1s, 0), w2, b2))
        in_dim = features_dim + u        # next layer sees cat(hidden, features)

    key, k_agg, k_lin, k_out = jax.random.split(key, 4)
    agg_params = init_linear(k_agg, hidden_dim, agg_units)
    lin_params = init_linear(k_lin, agg_units, units[0])
    out_params = init_linear(k_out, units[0], units[1])
    return conv_params, agg_params, lin_params, out_params


# ----------------------------------------------------------------------------
# Pure-JAX f32 reference (for correctness check)
# ----------------------------------------------------------------------------
def reference_forward(adj, feats, conv_params, agg_params, lin_params,
                      out_params, edges):
    hidden = None
    ann = feats
    for (w1, b1, w2, b2) in conv_params:
        if hidden is not None:
            ann = jnp.concatenate([hidden, feats], axis=-1)
        total = jnp.einsum("bnf,fu->bnu", ann, w2) + b2
        for e in range(edges - 1):
            res = jnp.einsum("bnf,fu->bnu", ann, w1[e]) + b1[e]
            total = total + jnp.einsum("bij,bju->biu", adj[:, e], res)
        hidden = jnp.tanh(total)
    lin = jnp.einsum("bnh,hu->bnu", hidden, agg_params[0]) + agg_params[1]
    agg = jnp.tanh(jnp.sum(jax.nn.sigmoid(lin) * jnp.tanh(lin), axis=1))
    h = jnp.tanh(agg @ lin_params[0] + lin_params[1])
    return h @ out_params[0] + out_params[1]


# ----------------------------------------------------------------------------
if __name__ == "__main__":
    # Small config consistent with the module:
    #   gconv_units = [[16, 32], 32], units = [16, 1], features_dim=8, edges=3
    gconv_units = [[16, 32], 32]
    units = [16, 1]
    features_dim = 8
    edges = 3
    B, N = 16, 8

    key = jax.random.PRNGKey(0)
    k_params, k_adj, k_feat = jax.random.split(key, 3)

    params = init_discriminator(k_params, gconv_units, units, features_dim,
                                edges)
    conv_params, agg_params, lin_params, out_params = params

    adj = jax.random.uniform(k_adj, (B, edges, N, N), jnp.float32)
    feats = jax.random.normal(k_feat, (B, N, features_dim), jnp.float32)

    out = discriminator_forward(adj, feats, conv_params, agg_params,
                                lin_params, out_params, edges=edges,
                                batch_tile=8)   # grid=(2,): both v7x TCs busy
    out = jax.block_until_ready(out)

    ref = reference_forward(adj, feats, conv_params, agg_params,
                            lin_params, out_params, edges)
    assert out.shape == (B, units[1])
    # bf16 MXU operands vs. pure-f32 reference -> loosened tolerance.
    assert jnp.allclose(out, ref, atol=5e-2, rtol=5e-2), (out, ref)
    print("KERNEL_OK")
</pallas_src>

<mosaic_0001>
module attributes {stable_mosaic.version = 11 : i64} {
  func.func @kernel(%arg0: i32, %arg1: memref<8x2x8x8xf32, #tpu.memory_space<vmem>>, %arg2: memref<8x8x8xf32, #tpu.memory_space<vmem>>, %arg3: memref<8x128xbf16, #tpu.memory_space<vmem>>, %arg4: memref<1x128xf32, #tpu.memory_space<vmem>>, %arg5: memref<16x128xbf16, #tpu.memory_space<vmem>>, %arg6: memref<8x128xbf16, #tpu.memory_space<vmem>>, %arg7: memref<1x128xf32, #tpu.memory_space<vmem>>, %arg8: memref<32x32xbf16, #tpu.memory_space<vmem>>, %arg9: memref<1x32xf32, #tpu.memory_space<vmem>>, %arg10: memref<32x16xbf16, #tpu.memory_space<vmem>>, %arg11: memref<1x16xf32, #tpu.memory_space<vmem>>, %arg12: memref<16x1xbf16, #tpu.memory_space<vmem>>, %arg13: memref<1x1xf32, #tpu.memory_space<vmem>>, %arg14: memref<8x128xf32, #tpu.memory_space<vmem>>) attributes {dimension_semantics = [#tpu.dimension_semantics<parallel>], iteration_bounds = array<i64: 2>, scalar_prefetch = 0 : i64, scratch_operands = 0 : i64, tpu.core_type = #tpu.core_type<tc>, window_params = [{transform_indices = @transform_0, window_bounds = array<i64: 8, 2, 8, 8>}, {transform_indices = @transform_1, window_bounds = array<i64: 8, 8, 8>}, {pipeline_mode = #tpu.pipeline_mode<synchronous>, transform_indices = @transform_2, window_bounds = array<i64: 8, 128>}, {pipeline_mode = #tpu.pipeline_mode<synchronous>, transform_indices = @transform_3, window_bounds = array<i64: 1, 128>}, {pipeline_mode = #tpu.pipeline_mode<synchronous>, transform_indices = @transform_4, window_bounds = array<i64: 16, 128>}, {pipeline_mode = #tpu.pipeline_mode<synchronous>, transform_indices = @transform_5, window_bounds = array<i64: 8, 128>}, {pipeline_mode = #tpu.pipeline_mode<synchronous>, transform_indices = @transform_6, window_bounds = array<i64: 1, 128>}, {pipeline_mode = #tpu.pipeline_mode<synchronous>, transform_indices = @transform_7, window_bounds = array<i64: 32, 32>}, {pipeline_mode = #tpu.pipeline_mode<synchronous>, transform_indices = @transform_8, window_bounds = array<i64: 1, 32>}, {pipeline_mode = #tpu.pipeline_mode<synchronous>, transform_indices = @transform_9, window_bounds = array<i64: 32, 16>}, {pipeline_mode = #tpu.pipeline_mode<synchronous>, transform_indices = @transform_10, window_bounds = array<i64: 1, 16>}, {pipeline_mode = #tpu.pipeline_mode<synchronous>, transform_indices = @transform_11, window_bounds = array<i64: 16, 1>}, {pipeline_mode = #tpu.pipeline_mode<synchronous>, transform_indices = @transform_12, window_bounds = array<i64: 1, 1>}, {transform_indices = @transform_13, window_bounds = array<i64: 8, 128>}]} {
    %c0 = arith.constant 0 : index
    %c0_0 = arith.constant 0 : index
    %c0_1 = arith.constant 0 : index
    %c0_2 = arith.constant 0 : index
    %0 = vector.load %arg1[%c0, %c0_0, %c0_1, %c0_2] : memref<8x2x8x8xf32, #tpu.memory_space<vmem>>, vector<8x2x8x8xf32>
    %1 = vector.extract_strided_slice %0 {offsets = [0, 0, 0, 0], sizes = [8, 1, 8, 8], strides = [1, 1, 1, 1]} : vector<8x2x8x8xf32> to vector<8x1x8x8xf32>
    %2 = vector.shape_cast %1 : vector<8x1x8x8xf32> to vector<8x8x8xf32>
    %3 = vector.extract_strided_slice %0 {offsets = [0, 1, 0, 0], sizes = [8, 1, 8, 8], strides = [1, 1, 1, 1]} : vector<8x2x8x8xf32> to vector<8x1x8x8xf32>
    %4 = vector.shape_cast %3 : vector<8x1x8x8xf32> to vector<8x8x8xf32>
    %5 = tpu.concatenate %2, %4 in 2 : vector<8x8x8xf32>, vector<8x8x8xf32> -> vector<8x8x16xf32>
    %6 = arith.truncf %5 : vector<8x8x16xf32> to vector<8x8x16xbf16>
    %c0_3 = arith.constant 0 : index
    %c0_4 = arith.constant 0 : index
    %c0_5 = arith.constant 0 : index
    %7 = vector.load %arg2[%c0_3, %c0_4, %c0_5] : memref<8x8x8xf32, #tpu.memory_space<vmem>>, vector<8x8x8xf32>
    %8 = vector.shape_cast %7 : vector<8x8x8xf32> to vector<64x8xf32>
    %9 = arith.truncf %8 : vector<64x8xf32> to vector<64x8xbf16>
    %c0_6 = arith.constant 0 : index
    %c0_7 = arith.constant 0 : index
    %10 = vector.load %arg3[%c0_6, %c0_7] : memref<8x128xbf16, #tpu.memory_space<vmem>>, vector<8x128xbf16>
    %c0_8 = arith.constant 0 : index
    %c0_9 = arith.constant 0 : index
    %11 = vector.load %arg4[%c0_8, %c0_9] : memref<1x128xf32, #tpu.memory_space<vmem>>, vector<1x128xf32>
    %cst = arith.constant dense<0.000000e+00> : vector<64x128xf32>
    %12 = tpu.matmul %9, %10, %cst {dimension_numbers = #tpu.dot_dimension_numbers<[1], [0], [0], [1], [0, 0, 1, 1], [], []>} : vector<64x8xbf16>, vector<8x128xbf16>, vector<64x128xf32> -> vector<64x128xf32>
    %13 = vector.broadcast %11 : vector<1x128xf32> to vector<64x128xf32>
    %14 = arith.addf %12, %13 : vector<64x128xf32>
    %15 = vector.shape_cast %14 : vector<64x128xf32> to vector<8x8x128xf32>
    %16 = vector.extract_strided_slice %15 {offsets = [0, 0, 32], sizes = [8, 8, 16], strides = [1, 1, 1]} : vector<8x8x128xf32> to vector<8x8x16xf32>
    %17 = vector.extract_strided_slice %15 {offsets = [0, 0, 0], sizes = [8, 8, 16], strides = [1, 1, 1]} : vector<8x8x128xf32> to vector<8x8x16xf32>
    %18 = vector.extract_strided_slice %15 {offsets = [0, 0, 16], sizes = [8, 8, 16], strides = [1, 1, 1]} : vector<8x8x128xf32> to vector<8x8x16xf32>
    %19 = tpu.concatenate %17, %18 in 1 : vector<8x8x16xf32>, vector<8x8x16xf32> -> vector<8x16x16xf32>
    %20 = arith.truncf %19 : vector<8x16x16xf32> to vector<8x16x16xbf16>
    %cst_10 = arith.constant dense<0.000000e+00> : vector<8x8x16xf32>
    %21 = tpu.matmul %6, %20, %cst_10 {dimension_numbers = #tpu.dot_dimension_numbers<[2], [1], [1], [2], [0, 0, 0, 1, 1, 2], [0], [0]>} : vector<8x8x16xbf16>, vector<8x16x16xbf16>, vector<8x8x16xf32> -> vector<8x8x16xf32>
    %22 = arith.addf %16, %21 : vector<8x8x16xf32>
    %23 = math.tanh %22 : vector<8x8x16xf32>
    %24 = vector.shape_cast %23 : vector<8x8x16xf32> to vector<64x16xf32>
    %25 = arith.truncf %24 : vector<64x16xf32> to vector<64x16xbf16>
    %c0_11 = arith.constant 0 : index
    %c0_12 = arith.constant 0 : index
    %26 = vector.load %arg5[%c0_11, %c0_12] : memref<16x128xbf16, #tpu.memory_space<vmem>>, vector<16x128xbf16>
    %c0_13 = arith.constant 0 : index
    %c0_14 = arith.constant 0 : index
    %27 = vector.load %arg6[%c0_13, %c0_14] : memref<8x128xbf16, #tpu.memory_space<vmem>>, vector<8x128xbf16>
    %c0_15 = arith.constant 0 : index
    %c0_16 = arith.constant 0 : index
    %28 = vector.load %arg7[%c0_15, %c0_16] : memref<1x128xf32, #tpu.memory_space<vmem>>, vector<1x128xf32>
    %cst_17 = arith.constant dense<0.000000e+00> : vector<64x128xf32>
    %29 = tpu.matmul %25, %26, %cst_17 {dimension_numbers = #tpu.dot_dimension_numbers<[1], [0], [0], [1], [0, 0, 1, 1], [], []>} : vector<64x16xbf16>, vector<16x128xbf16>, vector<64x128xf32> -> vector<64x128xf32>
    %cst_18 = arith.constant dense<0.000000e+00> : vector<64x128xf32>
    %30 = tpu.matmul %9, %27, %cst_18 {dimension_numbers = #tpu.dot_dimension_numbers<[1], [0], [0], [1], [0, 0, 1, 1], [], []>} : vector<64x8xbf16>, vector<8x128xbf16>, vector<64x128xf32> -> vector<64x128xf32>
    %31 = arith.addf %29, %30 : vector<64x128xf32>
    %32 = vector.broadcast %28 : vector<1x128xf32> to vector<64x128xf32>
    %33 = arith.addf %31, %32 : vector<64x128xf32>
    %34 = vector.shape_cast %33 : vector<64x128xf32> to vector<8x8x128xf32>
    %35 = vector.extract_strided_slice %34 {offsets = [0, 0, 64], sizes = [8, 8, 32], strides = [1, 1, 1]} : vector<8x8x128xf32> to vector<8x8x32xf32>
    %36 = vector.extract_strided_slice %34 {offsets = [0, 0, 0], sizes = [8, 8, 32], strides = [1, 1, 1]} : vector<8x8x128xf32> to vector<8x8x32xf32>
    %37 = vector.extract_strided_slice %34 {offsets = [0, 0, 32], sizes = [8, 8, 32], strides = [1, 1, 1]} : vector<8x8x128xf32> to vector<8x8x32xf32>
    %38 = tpu.concatenate %36, %37 in 1 : vector<8x8x32xf32>, vector<8x8x32xf32> -> vector<8x16x32xf32>
    %39 = arith.truncf %38 : vector<8x16x32xf32> to vector<8x16x32xbf16>
    %cst_19 = arith.constant dense<0.000000e+00> : vector<8x8x32xf32>
    %40 = tpu.matmul %6, %39, %cst_19 {dimension_numbers = #tpu.dot_dimension_numbers<[2], [1], [1], [2], [0, 0, 0, 1, 1, 2], [0], [0]>} : vector<8x8x16xbf16>, vector<8x16x32xbf16>, vector<8x8x32xf32> -> vector<8x8x32xf32>
    %41 = arith.addf %35, %40 : vector<8x8x32xf32>
    %42 = math.tanh %41 : vector<8x8x32xf32>
    %43 = vector.shape_cast %42 : vector<8x8x32xf32> to vector<64x32xf32>
    %44 = arith.truncf %43 : vector<64x32xf32> to vector<64x32xbf16>
    %c0_20 = arith.constant 0 : index
    %c0_21 = arith.constant 0 : index
    %45 = vector.load %arg8[%c0_20, %c0_21] : memref<32x32xbf16, #tpu.memory_space<vmem>>, vector<32x32xbf16>
    %c0_22 = arith.constant 0 : index
    %c0_23 = arith.constant 0 : index
    %46 = vector.load %arg9[%c0_22, %c0_23] : memref<1x32xf32, #tpu.memory_space<vmem>>, vector<1x32xf32>
    %c0_24 = arith.constant 0 : index
    %c0_25 = arith.constant 0 : index
    %47 = vector.load %arg10[%c0_24, %c0_25] : memref<32x16xbf16, #tpu.memory_space<vmem>>, vector<32x16xbf16>
    %c0_26 = arith.constant 0 : index
    %c0_27 = arith.constant 0 : index
    %48 = vector.load %arg11[%c0_26, %c0_27] : memref<1x16xf32, #tpu.memory_space<vmem>>, vector<1x16xf32>
    %c0_28 = arith.constant 0 : index
    %c0_29 = arith.constant 0 : index
    %49 = vector.load %arg12[%c0_28, %c0_29] : memref<16x1xbf16, #tpu.memory_space<vmem>>, vector<16x1xbf16>
    %c0_30 = arith.constant 0 : index
    %c0_31 = arith.constant 0 : index
    %50 = vector.load %arg13[%c0_30, %c0_31] : memref<1x1xf32, #tpu.memory_space<vmem>>, vector<1x1xf32>
    %cst_32 = arith.constant dense<0.000000e+00> : vector<64x32xf32>
    %51 = tpu.matmul %44, %45, %cst_32 {dimension_numbers = #tpu.dot_dimension_numbers<[1], [0], [0], [1], [0, 0, 1, 1], [], []>} : vector<64x32xbf16>, vector<32x32xbf16>, vector<64x32xf32> -> vector<64x32xf32>
    %52 = vector.broadcast %46 : vector<1x32xf32> to vector<64x32xf32>
    %53 = arith.addf %51, %52 : vector<64x32xf32>
    %54 = vector.shape_cast %53 : vector<64x32xf32> to vector<8x8x32xf32>
    %55 = arith.negf %54 : vector<8x8x32xf32>
    %56 = math.exp %55 : vector<8x8x32xf32>
    %cst_33 = arith.constant 1.000000e+00 : f32
    %57 = vector.broadcast %cst_33 : f32 to vector<8x8x32xf32>
    %58 = arith.addf %57, %56 : vector<8x8x32xf32>
    %59 = arith.divf %57, %58 : vector<8x8x32xf32>
    %60 = math.tanh %54 : vector<8x8x32xf32>
    %61 = arith.mulf %59, %60 : vector<8x8x32xf32>
    %cst_34 = arith.constant dense<0.000000e+00> : vector<8x32xf32>
    %62 = vector.multi_reduction <add>, %61, %cst_34 [1] : vector<8x8x32xf32> to vector<8x32xf32>
    %63 = math.tanh %62 : vector<8x32xf32>
    %64 = arith.truncf %63 : vector<8x32xf32> to vector<8x32xbf16>
    %cst_35 = arith.constant dense<0.000000e+00> : vector<8x16xf32>
    %65 = tpu.matmul %64, %47, %cst_35 {dimension_numbers = #tpu.dot_dimension_numbers<[1], [0], [0], [1], [0, 0, 1, 1], [], []>} : vector<8x32xbf16>, vector<32x16xbf16>, vector<8x16xf32> -> vector<8x16xf32>
    %66 = vector.broadcast %48 : vector<1x16xf32> to vector<8x16xf32>
    %67 = arith.addf %65, %66 : vector<8x16xf32>
    %68 = math.tanh %67 : vector<8x16xf32>
    %69 = arith.truncf %68 : vector<8x16xf32> to vector<8x16xbf16>
    %cst_36 = arith.constant dense<0.000000e+00> : vector<8x1xf32>
    %70 = tpu.matmul %69, %49, %cst_36 {dimension_numbers = #tpu.dot_dimension_numbers<[1], [0], [0], [1], [0, 0, 1, 1], [], []>} : vector<8x16xbf16>, vector<16x1xbf16>, vector<8x1xf32> -> vector<8x1xf32>
    %71 = vector.broadcast %50 : vector<1x1xf32> to vector<8x1xf32>
    %72 = arith.addf %70, %71 : vector<8x1xf32>
    %cst_37 = arith.constant 0.000000e+00 : f32
    %73 = vector.broadcast %cst_37 : f32 to vector<8x127xf32>
    %74 = tpu.concatenate %72, %73 in 1 : vector<8x1xf32>, vector<8x127xf32> -> vector<8x128xf32>
    %c0_38 = arith.constant 0 : index
    %c0_39 = arith.constant 0 : index
    %75 = vector.load %arg14[%c0_38, %c0_39] : memref<8x128xf32, #tpu.memory_space<vmem>>, vector<8x128xf32>
    tpu.vector_store %arg14[%c0_38, %c0_39], %74 {strides = array<i32>} : memref<8x128xf32, #tpu.memory_space<vmem>>, vector<8x128xf32>,
    return
  }
  func.func @transform_0(%arg0: i32) -> (i32, i32, i32, i32) {
    %c0_i32 = arith.constant 0 : i32
    %c0_i32_0 = arith.constant 0 : i32
    %c0_i32_1 = arith.constant 0 : i32
    %c0_i32_2 = arith.constant 0 : i32
    return %arg0, %c0_i32, %c0_i32_0, %c0_i32_1 : i32, i32, i32, i32
  }
  func.func @transform_1(%arg0: i32) -> (i32, i32, i32) {
    %c0_i32 = arith.constant 0 : i32
    %c0_i32_0 = arith.constant 0 : i32
    %c0_i32_1 = arith.constant 0 : i32
    return %arg0, %c0_i32, %c0_i32_0 : i32, i32, i32
  }
  func.func @transform_2(%arg0: i32) -> (i32, i32) {
    %c0_i32 = arith.constant 0 : i32
    %c0_i32_0 = arith.constant 0 : i32
    %c0_i32_1 = arith.constant 0 : i32
    return %c0_i32, %c0_i32_0 : i32, i32
  }
  func.func @transform_3(%arg0: i32) -> (i32, i32) {
    %c0_i32 = arith.constant 0 : i32
    %c0_i32_0 = arith.constant 0 : i32
    %c0_i32_1 = arith.constant 0 : i32
    return %c0_i32, %c0_i32_0 : i32, i32
  }
  func.func @transform_4(%arg0: i32) -> (i32, i32) {
    %c0_i32 = arith.constant 0 : i32
    %c0_i32_0 = arith.constant 0 : i32
    %c0_i32_1 = arith.constant 0 : i32
    return %c0_i32, %c0_i32_0 : i32, i32
  }
  func.func @transform_5(%arg0: i32) -> (i32, i32) {
    %c0_i32 = arith.constant 0 : i32
    %c0_i32_0 = arith.constant 0 : i32
    %c0_i32_1 = arith.constant 0 : i32
    return %c0_i32, %c0_i32_0 : i32, i32
  }
  func.func @transform_6(%arg0: i32) -> (i32, i32) {
    %c0_i32 = arith.constant 0 : i32
    %c0_i32_0 = arith.constant 0 : i32
    %c0_i32_1 = arith.constant 0 : i32
    return %c0_i32, %c0_i32_0 : i32, i32
  }
  func.func @transform_7(%arg0: i32) -> (i32, i32) {
    %c0_i32 = arith.constant 0 : i32
    %c0_i32_0 = arith.constant 0 : i32
    %c0_i32_1 = arith.constant 0 : i32
    return %c0_i32, %c0_i32_0 : i32, i32
  }
  func.func @transform_8(%arg0: i32) -> (i32, i32) {
    %c0_i32 = arith.constant 0 : i32
    %c0_i32_0 = arith.constant 0 : i32
    %c0_i32_1 = arith.constant 0 : i32
    return %c0_i32, %c0_i32_0 : i32, i32
  }
  func.func @transform_9(%arg0: i32) -> (i32, i32) {
    %c0_i32 = arith.constant 0 : i32
    %c0_i32_0 = arith.constant 0 : i32
    %c0_i32_1 = arith.constant 0 : i32
    return %c0_i32, %c0_i32_0 : i32, i32
  }
  func.func @transform_10(%arg0: i32) -> (i32, i32) {
    %c0_i32 = arith.constant 0 : i32
    %c0_i32_0 = arith.constant 0 : i32
    %c0_i32_1 = arith.constant 0 : i32
    return %c0_i32, %c0_i32_0 : i32, i32
  }
  func.func @transform_11(%arg0: i32) -> (i32, i32) {
    %c0_i32 = arith.constant 0 : i32
    %c0_i32_0 = arith.constant 0 : i32
    %c0_i32_1 = arith.constant 0 : i32
    return %c0_i32, %c0_i32_0 : i32, i32
  }
  func.func @transform_12(%arg0: i32) -> (i32, i32) {
    %c0_i32 = arith.constant 0 : i32
    %c0_i32_0 = arith.constant 0 : i32
    %c0_i32_1 = arith.constant 0 : i32
    return %c0_i32, %c0_i32_0 : i32, i32
  }
  func.func @transform_13(%arg0: i32) -> (i32, i32) {
    %c0_i32 = arith.constant 0 : i32
    %c0_i32_0 = arith.constant 0 : i32
    return %arg0, %c0_i32 : i32, i32
  }
}

</mosaic_0001>

<llo_original>
// kernel: discriminator_forward.1
$region0: #{discriminator_forward.1}
  #allocation0 [shape = 'u32[]', space=smem, size = 0x4, offset = 0x4, fixed_abs, tag = 'smem constant byte address 0x4 - core index']
  #allocation1 [shape = 'u32[72,128]{1,0:T(1,128)}', space=vmem, size = 0x9000, scoped, tag = 'internal scratch']
  #allocation2 [shape = 'f32[1,1]{1,0:T(1,128)S(1)}', space=vmem, size = 0x200, scoped, tag = 'scoped memory for discriminator_forward.1']
  %s0 = inlined_call_operand.vmem [shape: f32[16,3,8,8], index: 0, kind: input, shape index: {}]
  %s1 = inlined_call_operand.vmem [shape: f32[16,8,8], index: 1, kind: input, shape index: {}]
  %s2 = inlined_call_operand.vmem [shape: bf16[8,128], index: 2, kind: input, shape index: {}]
  %s3 = inlined_call_operand.vmem [shape: f32[1,128], index: 3, kind: input, shape index: {}]
  %s4 = inlined_call_operand.vmem [shape: bf16[16,128], index: 4, kind: input, shape index: {}]
  %s5 = inlined_call_operand.vmem [shape: bf16[8,128], index: 5, kind: input, shape index: {}]
  %s6 = inlined_call_operand.vmem [shape: f32[1,128], index: 6, kind: input, shape index: {}]
  %s7 = inlined_call_operand.vmem [shape: bf16[32,32], index: 7, kind: input, shape index: {}]
  %s8 = inlined_call_operand.vmem [shape: f32[1,32], index: 8, kind: input, shape index: {}]
  %s9 = inlined_call_operand.vmem [shape: bf16[32,16], index: 9, kind: input, shape index: {}]
  %s10 = inlined_call_operand.vmem [shape: f32[1,16], index: 10, kind: input, shape index: {}]
  %s11 = inlined_call_operand.vmem [shape: bf16[16,1], index: 11, kind: input, shape index: {}]
  %s12 = inlined_call_operand.<no memory space> [shape: f32[1,1], index: 12, kind: input, shape index: {}]
  %s13 = inlined_call_operand.vmem [shape: f32[16,128], index: 13, kind: output, shape index: {}]
  %s14 = sld [smem:[#allocation0]]
  $region123: #{discriminator_forward.1} parent=0
    _
  %s16 = ssub.s32 1, %s14
  %s17 = scalar_select 0, %s16, %s14
  %v18 = vstv %s12
  %19 = vst [vmem:[#allocation2] sm:$0x1] %v18
  $region1: #{discriminator_forward.1} parent=0
    #allocation3 [shape = 'u8[131072]{0}', space=vmem, size = 0x20000, scoped, tag = 'input window, operand 0']
    loop: start=0, step=1, limit=4
    $region2: #{discriminator_forward.1} parent=1 // loop_pre_header
      _
    $region3: #{discriminator_forward.1} parent=1 // loop_header
      %s21 = sphi 0, %s25
      %p22 = scmp.ge.s32.totalorder %s21, 4
      %s31 = sphi 0, %s33
      %s34 = sphi 0, %s31
      %s35 = sphi 0, %s34
      %s51 = sphi 0, %s35
      %s57 = sphi 0, %s59
      %s60 = sphi 0, %s57
      %s61 = sphi 0, %s60
      %s77 = sphi 0, %s61
      %s81 = sphi 0, %s81
      %s83 = sphi 0, %s81
      %s84 = sphi 0, %s83
      %s98 = sphi 0, %s84
      %s102 = sphi 0, %s102
      %s104 = sphi 0, %s102
      %s105 = sphi 0, %s104
      %s119 = sphi 0, %s105
      %s123 = sphi 0, %s123
      %s125 = sphi 0, %s123
      %s126 = sphi 0, %s125
      %s140 = sphi 0, %s126
      %s144 = sphi 0, %s144
      %s146 = sphi 0, %s144
      %s147 = sphi 0, %s146
      %s161 = sphi 0, %s147
      %s165 = sphi 0, %s165
      %s167 = sphi 0, %s165
      %s168 = sphi 0, %s167
      %s182 = sphi 0, %s168
      %s186 = sphi 0, %s186
      %s188 = sphi 0, %s186
      %s189 = sphi 0, %s188
      %s203 = sphi 0, %s189
      %s207 = sphi 0, %s207
      %s209 = sphi 0, %s207
      %s210 = sphi 0, %s209
      %s224 = sphi 0, %s210
      %s228 = sphi 0, %s228
      %s230 = sphi 0, %s228
      %s231 = sphi 0, %s230
      %s245 = sphi 0, %s231
      %s249 = sphi 0, %s249
      %s251 = sphi 0, %s249
      %s252 = sphi 0, %s251
      %s266 = sphi 0, %s252
      %s270 = sphi 0, %s270
      %s272 = sphi 0, %s270
      %s273 = sphi 0, %s272
      %s287 = sphi 0, %s273
      %s291 = sphi 0, %s291
      %s293 = sphi 0, %s291
      %s294 = sphi 0, %s293
      %s308 = sphi 0, %s294
      %s314 = sphi 0, %s316
      %s317 = sphi 0, %s314
      %s318 = sphi 0, %s317
      %s334 = sphi 0, %s318
    $region4: #{discriminator_forward.1} parent=1 // loop_header_branch
      %24 = sbr.rel (%p22) target = $region8
    $region5: #{discriminator_forward.1} parent=1 // loop_body
      %s26 = ssub.s32 %s21, 1
      %s27 = ssub.s32 %s21, 2
      %s28 = sadd.s32 %s21, 1
      %s29 = ssub.s32 %s21, %s28
      %p30 = scmp.eq.s32.totalorder %s29, 0
      %s32 = sadd.s32 %s31, 1
      %s33 = scalar_select %p30, %s31, %s32
      %p36 = pneg %p30
      %p37 = scmp.eq.s32.totalorder %s21, 1
      %p38 = por %p36, %p37
      %p39 = scmp.ne.s32.totalorder %s31, %s34
      %p40 = scmp.eq.s32.totalorder %s21, 0
      %p41 = por %p39, %p40
      %p42 = scmp.ne.s32.totalorder %s31, %s34
      %p43 = scmp.eq.s32.totalorder %s26, 1
      %p44 = por %p42, %p43
      %p45 = scmp.ne.s32.totalorder %s34, %s35
      %p46 = scmp.eq.s32.totalorder %s26, 0
      %p47 = por %p45, %p46
      %p48 = scmp.ne.s32.totalorder %s34, %s35
      %p49 = scmp.eq.s32.totalorder %s27, 1
      %p50 = por %p48, %p49
      %p52 = scmp.ne.s32.totalorder %s35, %s51
      %p53 = scmp.eq.s32.totalorder %s27, 0
      %p54 = por %p52, %p53
      %s55 = ssub.s32 %s21, %s28
      %p56 = scmp.eq.s32.totalorder %s55, 0
      %s58 = sadd.s32 %s57, 1
      %s59 = scalar_select %p56, %s57, %s58
      %p62 = pneg %p56
      %p63 = scmp.eq.s32.totalorder %s21, 1
      %p64 = por %p62, %p63
      %p65 = scmp.ne.s32.totalorder %s57, %s60
      %p66 = scmp.eq.s32.totalorder %s21, 0
      %p67 = por %p65, %p66
      %p68 = scmp.ne.s32.totalorder %s57, %s60
      %p69 = scmp.eq.s32.totalorder %s26, 1
      %p70 = por %p68, %p69
      %p71 = scmp.ne.s32.totalorder %s60, %s61
      %p72 = scmp.eq.s32.totalorder %s26, 0
      %p73 = por %p71, %p72
      %p74 = scmp.ne.s32.totalorder %s60, %s61
      %p75 = scmp.eq.s32.totalorder %s27, 1
      %p76 = por %p74, %p75
      %p78 = scmp.ne.s32.totalorder %s61, %s77
      %p79 = scmp.eq.s32.totalorder %s27, 0
      %p80 = por %p78, %p79
      %s82 = sadd.s32 %s81, 1
      %p85 = scmp.eq.s32.totalorder %s21, 1
      %p86 = scmp.ne.s32.totalorder %s81, %s83
      %p87 = scmp.eq.s32.totalorder %s21, 0
      %p88 = por %p86, %p87
      %p89 = scmp.ne.s32.totalorder %s81, %s83
      %p90 = scmp.eq.s32.totalorder %s26, 1
      %p91 = por %p89, %p90
      %p92 = scmp.ne.s32.totalorder %s83, %s84
      %p93 = scmp.eq.s32.totalorder %s26, 0
      %p94 = por %p92, %p93
      %p95 = scmp.ne.s32.totalorder %s83, %s84
      %p96 = scmp.eq.s32.totalorder %s27, 1
      %p97 = por %p95, %p96
      %p99 = scmp.ne.s32.totalorder %s84, %s98
      %p100 = scmp.eq.s32.totalorder %s27, 0
      %p101 = por %p99, %p100
      %s103 = sadd.s32 %s102, 1
      %p106 = scmp.eq.s32.totalorder %s21, 1
      %p107 = scmp.ne.s32.totalorder %s102, %s104
      %p108 = scmp.eq.s32.totalorder %s21, 0
      %p109 = por %p107, %p108
      %p110 = scmp.ne.s32.totalorder %s102, %s104
      %p111 = scmp.eq.s32.totalorder %s26, 1
      %p112 = por %p110, %p111
      %p113 = scmp.ne.s32.totalorder %s104, %s105
      %p114 = scmp.eq.s32.totalorder %s26, 0
      %p115 = por %p113, %p114
      %p116 = scmp.ne.s32.totalorder %s104, %s105
      %p117 = scmp.eq.s32.totalorder %s27, 1
      %p118 = por %p116, %p117
      %p120 = scmp.ne.s32.totalorder %s105, %s119
      %p121 = scmp.eq.s32.totalorder %s27, 0
      %p122 = por %p120, %p121
      %s124 = sadd.s32 %s123, 1
      %p127 = scmp.eq.s32.totalorder %s21, 1
      %p128 = scmp.ne.s32.totalorder %s123, %s125
      %p129 = scmp.eq.s32.totalorder %s21, 0
      %p130 = por %p128, %p129
      %p131 = scmp.ne.s32.totalorder %s123, %s125
      %p132 = scmp.eq.s32.totalorder %s26, 1
      %p133 = por %p131, %p132
      %p134 = scmp.ne.s32.totalorder %s125, %s126
      %p135 = scmp.eq.s32.totalorder %s26, 0
      %p136 = por %p134, %p135
      %p137 = scmp.ne.s32.totalorder %s125, %s126
      %p138 = scmp.eq.s32.totalorder %s27, 1
      %p139 = por %p137, %p138
      %p141 = scmp.ne.s32.totalorder %s126, %s140
      %p142 = scmp.eq.s32.totalorder %s27, 0
      %p143 = por %p141, %p142
      %s145 = sadd.s32 %s144, 1
      %p148 = scmp.eq.s32.totalorder %s21, 1
      %p149 = scmp.ne.s32.totalorder %s144, %s146
      %p150 = scmp.eq.s32.totalorder %s21, 0
      %p151 = por %p149, %p150
      %p152 = scmp.ne.s32.totalorder %s144, %s146
      %p153 = scmp.eq.s32.totalorder %s26, 1
      %p154 = por %p152, %p153
      %p155 = scmp.ne.s32.totalorder %s146, %s147
      %p156 = scmp.eq.s32.totalorder %s26, 0
      %p157 = por %p155, %p156
      %p158 = scmp.ne.s32.totalorder %s146, %s147
      %p159 = scmp.eq.s32.totalorder %s27, 1
      %p160 = por %p158, %p159
      %p162 = scmp.ne.s32.totalorder %s147, %s161
      %p163 = scmp.eq.s32.totalorder %s27, 0
      %p164 = por %p162, %p163
      %s166 = sadd.s32 %s165, 1
      %p169 = scmp.eq.s32.totalorder %s21, 1
      %p170 = scmp.ne.s32.totalorder %s165, %s167
      %p171 = scmp.eq.s32.totalorder %s21, 0
      %p172 = por %p170, %p171
      %p173 = scmp.ne.s32.totalorder %s165, %s167
      %p174 = scmp.eq.s32.totalorder %s26, 1
      %p175 = por %p173, %p174
      %p176 = scmp.ne.s32.totalorder %s167, %s168
      %p177 = scmp.eq.s32.totalorder %s26, 0
      %p178 = por %p176, %p177
      %p179 = scmp.ne.s32.totalorder %s167, %s168
      %p180 = scmp.eq.s32.totalorder %s27, 1
      %p181 = por %p179, %p180
      %p183 = scmp.ne.s32.totalorder %s168, %s182
      %p184 = scmp.eq.s32.totalorder %s27, 0
      %p185 = por %p183, %p184
      %s187 = sadd.s32 %s186, 1
      %p190 = scmp.eq.s32.totalorder %s21, 1
      %p191 = scmp.ne.s32.totalorder %s186, %s188
      %p192 = scmp.eq.s32.totalorder %s21, 0
      %p193 = por %p191, %p192
      %p194 = scmp.ne.s32.totalorder %s186, %s188
      %p195 = scmp.eq.s32.totalorder %s26, 1
      %p196 = por %p194, %p195
      %p197 = scmp.ne.s32.totalorder %s188, %s189
      %p198 = scmp.eq.s32.totalorder %s26, 0
      %p199 = por %p197, %p198
      %p200 = scmp.ne.s32.totalorder %s188, %s189
      %p201 = scmp.eq.s32.totalorder %s27, 1
      %p202 = por %p200, %p201
      %p204 = scmp.ne.s32.totalorder %s189, %s203
      %p205 = scmp.eq.s32.totalorder %s27, 0
      %p206 = por %p204, %p205
      %s208 = sadd.s32 %s207, 1
      %p211 = scmp.eq.s32.totalorder %s21, 1
      %p212 = scmp.ne.s32.totalorder %s207, %s209
      %p213 = scmp.eq.s32.totalorder %s21, 0
      %p214 = por %p212, %p213
      %p215 = scmp.ne.s32.totalorder %s207, %s209
      %p216 = scmp.eq.s32.totalorder %s26, 1
      %p217 = por %p215, %p216
      %p218 = scmp.ne.s32.totalorder %s209, %s210
      %p219 = scmp.eq.s32.totalorder %s26, 0
      %p220 = por %p218, %p219
      %p221 = scmp.ne.s32.totalorder %s209, %s210
      %p222 = scmp.eq.s32.totalorder %s27, 1
      %p223 = por %p221, %p222
      %p225 = scmp.ne.s32.totalorder %s210, %s224
      %p226 = scmp.eq.s32.totalorder %s27, 0
      %p227 = por %p225, %p226
      %s229 = sadd.s32 %s228, 1
      %p232 = scmp.eq.s32.totalorder %s21, 1
      %p233 = scmp.ne.s32.totalorder %s228, %s230
      %p234 = scmp.eq.s32.totalorder %s21, 0
      %p235 = por %p233, %p234
      %p236 = scmp.ne.s32.totalorder %s228, %s230
      %p237 = scmp.eq.s32.totalorder %s26, 1
      %p238 = por %p236, %p237
      %p239 = scmp.ne.s32.totalorder %s230, %s231
      %p240 = scmp.eq.s32.totalorder %s26, 0
      %p241 = por %p239, %p240
      %p242 = scmp.ne.s32.totalorder %s230, %s231
      %p243 = scmp.eq.s32.totalorder %s27, 1
      %p244 = por %p242, %p243
      %p246 = scmp.ne.s32.totalorder %s231, %s245
      %p247 = scmp.eq.s32.totalorder %s27, 0
      %p248 = por %p246, %p247
      %s250 = sadd.s32 %s249, 1
      %p253 = scmp.eq.s32.totalorder %s21, 1
      %p254 = scmp.ne.s32.totalorder %s249, %s251
      %p255 = scmp.eq.s32.totalorder %s21, 0
      %p256 = por %p254, %p255
      %p257 = scmp.ne.s32.totalorder %s249, %s251
      %p258 = scmp.eq.s32.totalorder %s26, 1
      %p259 = por %p257, %p258
      %p260 = scmp.ne.s32.totalorder %s251, %s252
      %p261 = scmp.eq.s32.totalorder %s26, 0
      %p262 = por %p260, %p261
      %p263 = scmp.ne.s32.totalorder %s251, %s252
      %p264 = scmp.eq.s32.totalorder %s27, 1
      %p265 = por %p263, %p264
      %p267 = scmp.ne.s32.totalorder %s252, %s266
      %p268 = scmp.eq.s32.totalorder %s27, 0
      %p269 = por %p267, %p268
      %s271 = sadd.s32 %s270, 1
      %p274 = scmp.eq.s32.totalorder %s21, 1
      %p275 = scmp.ne.s32.totalorder %s270, %s272
      %p276 = scmp.eq.s32.totalorder %s21, 0
      %p277 = por %p275, %p276
      %p278 = scmp.ne.s32.totalorder %s270, %s272
      %p279 = scmp.eq.s32.totalorder %s26, 1
      %p280 = por %p278, %p279
      %p281 = scmp.ne.s32.totalorder %s272, %s273
      %p282 = scmp.eq.s32.totalorder %s26, 0
      %p283 = por %p281, %p282
      %p284 = scmp.ne.s32.totalorder %s272, %s273
      %p285 = scmp.eq.s32.totalorder %s27, 1
      %p286 = por %p284, %p285
      %p288 = scmp.ne.s32.totalorder %s273, %s287
      %p289 = scmp.eq.s32.totalorder %s27, 0
      %p290 = por %p288, %p289
      %s292 = sadd.s32 %s291, 1
      %p295 = scmp.eq.s32.totalorder %s21, 1
      %p296 = scmp.ne.s32.totalorder %s291, %s293
      %p297 = scmp.eq.s32.totalorder %s21, 0
      %p298 = por %p296, %p297
      %p299 = scmp.ne.s32.totalorder %s291, %s293
      %p300 = scmp.eq.s32.totalorder %s26, 1
      %p301 = por %p299, %p300
      %p302 = scmp.ne.s32.totalorder %s293, %s294
      %p303 = scmp.eq.s32.totalorder %s26, 0
      %p304 = por %p302, %p303
      %p305 = scmp.ne.s32.totalorder %s293, %s294
      %p306 = scmp.eq.s32.totalorder %s27, 1
      %p307 = por %p305, %p306
      %p309 = scmp.ne.s32.totalorder %s294, %s308
      %p310 = scmp.eq.s32.totalorder %s27, 0
      %p311 = por %p309, %p310
      %s312 = ssub.s32 %s21, %s28
      %p313 = scmp.eq.s32.totalorder %s312, 0
      %s315 = sadd.s32 %s314, 1
      %s316 = scalar_select %p313, %s314, %s315
      %p319 = pneg %p313
      %p320 = scmp.eq.s32.totalorder %s21, 1
      %p321 = por %p319, %p320
      %p322 = scmp.ne.s32.totalorder %s314, %s317
      %p323 = scmp.eq.s32.totalorder %s21, 0
      %p324 = por %p322, %p323
      %p325 = scmp.ne.s32.totalorder %s314, %s317
      %p326 = scmp.eq.s32.totalorder %s26, 1
      %p327 = por %p325, %p326
      %p328 = scmp.ne.s32.totalorder %s317, %s318
      %p329 = scmp.eq.s32.totalorder %s26, 0
      %p330 = por %p328, %p329
      %p331 = scmp.ne.s32.totalorder %s317, %s318
      %p332 = scmp.eq.s32.totalorder %s27, 1
      %p333 = por %p331, %p332
      %p335 = scmp.ne.s32.totalorder %s318, %s334
      %p336 = scmp.eq.s32.totalorder %s27, 0
      %p337 = por %p335, %p336
      %p338 = scmp.le.s32.totalorder 1, %s21
      %p339 = scmp.lt.s32.totalorder %s21, 3
      %p340 = pnand %p338, %p339
      %p341 = pneg %p340
      // Predicated region
      $region9: #{discriminator_forward.1} parent=5 // pred_check
        _
      $region10: #{discriminator_forward.1} parent=5 // pred_check_branch
        %343 = sbr.rel (%p340) target = $region12
      $region11: #{discriminator_forward.1} parent=5 // pred_region
        %s344 = ssub.s32 %s21, 1
        // Predicated region
        $region13: #{discriminator_forward.1} parent=11 // pred_check
          %p345 = pneg %p94
        $region14: #{discriminator_forward.1} parent=11 // pred_check_branch
          %347 = sbr.rel (%p345) target = $region16
        $region15: #{discriminator_forward.1} parent=11 // pred_region
          _
        $region16: #{discriminator_forward.1} parent=11 // pred_fallthru
          _
        // Predicated region
        $region17: #{discriminator_forward.1} parent=11 // pred_check
          %p348 = pneg %p115
        $region18: #{discriminator_forward.1} parent=11 // pred_check_branch
          %350 = sbr.rel (%p348) target = $region20
        $region19: #{discriminator_forward.1} parent=11 // pred_region
          _
        $region20: #{discriminator_forward.1} parent=11 // pred_fallthru
          _
        // Predicated region
        $region21: #{discriminator_forward.1} parent=11 // pred_check
          %p351 = pneg %p136
        $region22: #{discriminator_forward.1} parent=11 // pred_check_branch
          %353 = sbr.rel (%p351) target = $region24
        $region23: #{discriminator_forward.1} parent=11 // pred_region
          _
        $region24: #{discriminator_forward.1} parent=11 // pred_fallthru
          _
        // Predicated region
        $region25: #{discriminator_forward.1} parent=11 // pred_check
          %p354 = pneg %p157
        $region26: #{discriminator_forward.1} parent=11 // pred_check_branch
          %356 = sbr.rel (%p354) target = $region28
        $region27: #{discriminator_forward.1} parent=11 // pred_region
          _
        $region28: #{discriminator_forward.1} parent=11 // pred_fallthru
          _
        // Predicated region
        $region29: #{discriminator_forward.1} parent=11 // pred_check
          %p357 = pneg %p178
        $region30: #{discriminator_forward.1} parent=11 // pred_check_branch
          %359 = sbr.rel (%p357) target = $region32
        $region31: #{discriminator_forward.1} parent=11 // pred_region
          _
        $region32: #{discriminator_forward.1} parent=11 // pred_fallthru
          _
        // Predicated region
        $region33: #{discriminator_forward.1} parent=11 // pred_check
          %p360 = pneg %p199
        $region34: #{discriminator_forward.1} parent=11 // pred_check_branch
          %362 = sbr.rel (%p360) target = $region36
        $region35: #{discriminator_forward.1} parent=11 // pred_region
          _
        $region36: #{discriminator_forward.1} parent=11 // pred_fallthru
          _
        // Predicated region
        $region37: #{discriminator_forward.1} parent=11 // pred_check
          %p363 = pneg %p220
        $region38: #{discriminator_forward.1} parent=11 // pred_check_branch
          %365 = sbr.rel (%p363) target = $region40
        $region39: #{discriminator_forward.1} parent=11 // pred_region
          _
        $region40: #{discriminator_forward.1} parent=11 // pred_fallthru
          _
        // Predicated region
        $region41: #{discriminator_forward.1} parent=11 // pred_check
          %p366 = pneg %p241
        $region42: #{discriminator_forward.1} parent=11 // pred_check_branch
          %368 = sbr.rel (%p366) target = $region44
        $region43: #{discriminator_forward.1} parent=11 // pred_region
          _
        $region44: #{discriminator_forward.1} parent=11 // pred_fallthru
          _
        // Predicated region
        $region45: #{discriminator_forward.1} parent=11 // pred_check
          %p369 = pneg %p262
        $region46: #{discriminator_forward.1} parent=11 // pred_check_branch
          %371 = sbr.rel (%p369) target = $region48
        $region47: #{discriminator_forward.1} parent=11 // pred_region
          _
        $region48: #{discriminator_forward.1} parent=11 // pred_fallthru
          _
        // Predicated region
        $region49: #{discriminator_forward.1} parent=11 // pred_check
          %p372 = pneg %p283
        $region50: #{discriminator_forward.1} parent=11 // pred_check_branch
          %374 = sbr.rel (%p372) target = $region52
        $region51: #{discriminator_forward.1} parent=11 // pred_region
          _
        $region52: #{discriminator_forward.1} parent=11 // pred_fallthru
          _
        // Predicated region
        $region53: #{discriminator_forward.1} parent=11 // pred_check
          %p375 = pneg %p304
        $region54: #{discriminator_forward.1} parent=11 // pred_check_branch
          %377 = sbr.rel (%p375) target = $region56
        $region55: #{discriminator_forward.1} parent=11 // pred_region
          _
        $region56: #{discriminator_forward.1} parent=11 // pred_fallthru
          _
      $region12: #{discriminator_forward.1} parent=5 // pred_fallthru
        _
      %p378 = scmp.lt.s32.totalorder %s21, 2
      // Predicated region
      $region57: #{discriminator_forward.1} parent=5 // pred_check
        %p379 = pneg %p378
      $region58: #{discriminator_forward.1} parent=5 // pred_check_branch
        %381 = sbr.rel (%p379) target = $region60
      $region59: #{discriminator_forward.1} parent=5 // pred_region
        // Predicated region
        $region61: #{discriminator_forward.1} parent=59 // pred_check
          %p382 = pneg %p41
        $region62: #{discriminator_forward.1} parent=59 // pred_check_branch
          %384 = sbr.rel (%p382) target = $region64
        $region63: #{discriminator_forward.1} parent=59 // pred_region
          %s385 = sand.u32 %s31, 1
          %s386 = sand.u32 %s31, 1
          %s387 = smul.addr %s386, 128
          %s388 = scalar_lea.vmem [#allocation3], %s387
          %s389 = smul.u32 8, %s21
          %s390 = smul.addr %s389, 3
          %s391 = smul.addr %s390, 8
          %s392 = scalar_lea.vmem %s0, %s391
          // Predicated region
          $region65: #{discriminator_forward.1} parent=63 // pred_check
            _
          $region66: #{discriminator_forward.1} parent=63 // pred_check_branch
            %394 = sbr.rel (0) target = $region68
          $region67: #{discriminator_forward.1} parent=63 // pred_region
            // Predicated region
            $region69: #{discriminator_forward.1} parent=67 // pred_check
              _
            $region70: #{discriminator_forward.1} parent=67 // pred_check_branch
              %396 = sbr.rel (0) target = $region72
            $region71: #{discriminator_forward.1} parent=67 // pred_region
              // Predicated region
              $region84: #{discriminator_forward.1} parent=71 // pred_check
                _
              $region85: #{discriminator_forward.1} parent=71 // pred_check_branch
                %442 = sbr.rel (0) target = $region87
              $region86: #{discriminator_forward.1} parent=71 // pred_region
                loop: start=0, step=1, limit=1
                $region88: #{discriminator_forward.1} parent=86 // loop_pre_header
                  _
                $region89: #{discriminator_forward.1} parent=86 // loop_header
                  %s444 = sphi 0, %s448
                  %p445 = scmp.ge.s32.totalorder %s444, 1
                  %s449 = sphi %s392, %s392
                  %s450 = sphi %s388, %s388
                $region90: #{discriminator_forward.1} parent=86 // loop_header_branch
                  %447 = sbr.rel (%p445) target = $region94
                $region91: #{discriminator_forward.1} parent=86 // loop_body
                  %v451 = vld [vmem:[%s449] sm:$0xff]
                  %452 = vst [vmem:[%s450] sm:$0xff] %v451
                  %v453 = vld [vmem:[%s449 + $0x8] sm:$0xff]
                  %454 = vst [vmem:[%s450 + $0x8] sm:$0xff] %v453
                  %v455 = vld [vmem:[%s449 + $0x18] sm:$0xff]
                  %456 = vst [vmem:[%s450 + $0x10] sm:$0xff] %v455
                  %v457 = vld [vmem:[%s449 + $0x20] sm:$0xff]
                  %458 = vst [vmem:[%s450 + $0x18] sm:$0xff] %v457
                  %v459 = vld [vmem:[%s449 + $0x30] sm:$0xff]
                  %460 = vst [vmem:[%s450 + $0x20] sm:$0xff] %v459
                  %v461 = vld [vmem:[%s449 + $0x38] sm:$0xff]
                  %462 = vst [vmem:[%s450 + $0x28] sm:$0xff] %v461
                  %v463 = vld [vmem:[%s449 + $0x48] sm:$0xff]
                  %464 = vst [vmem:[%s450 + $0x30] sm:$0xff] %v463
                  %v465 = vld [vmem:[%s449 + $0x50] sm:$0xff]
                  %466 = vst [vmem:[%s450 + $0x38] sm:$0xff] %v465
                  %v467 = vld [vmem:[%s449 + $0x60] sm:$0xff]
                  %468 = vst [vmem:[%s450 + $0x40] sm:$0xff] %v467
                  %v469 = vld [vmem:[%s449 + $0x68] sm:$0xff]
                  %470 = vst [vmem:[%s450 + $0x48] sm:$0xff] %v469
                  %v471 = vld [vmem:[%s449 + $0x78] sm:$0xff]
                  %472 = vst [vmem:[%s450 + $0x50] sm:$0xff] %v471
                  %v473 = vld [vmem:[%s449 + $0x80] sm:$0xff]
                  %474 = vst [vmem:[%s450 + $0x58] sm:$0xff] %v473
                  %v475 = vld [vmem:[%s449 + $0x90] sm:$0xff]
                  %476 = vst [vmem:[%s450 + $0x60] sm:$0xff] %v475
                  %v477 = vld [vmem:[%s449 + $0x98] sm:$0xff]
                  %478 = vst [vmem:[%s450 + $0x68] sm:$0xff] %v477
                  %v479 = vld [vmem:[%s449 + $0xa8] sm:$0xff]
                  %480 = vst [vmem:[%s450 + $0x70] sm:$0xff] %v479
                  %v481 = vld [vmem:[%s449 + $0xb0] sm:$0xff]
                  %482 = vst [vmem:[%s450 + $0x78] sm:$0xff] %v481
                $region92: #{discriminator_forward.1} parent=86 // loop_footer
                  %s448 = sadd.s32 1, %s444
                $region93: #{discriminator_forward.1} parent=86 // loop_footer_branch
                  %443 = sbr.rel target = $region89
                $region94: #{discriminator_forward.1} parent=86 // loop_exit
                  _
              $region87: #{discriminator_forward.1} parent=71 // pred_fallthru
                _
              // Predicated region
              $region95: #{discriminator_forward.1} parent=71 // pred_check
                _
              $region96: #{discriminator_forward.1} parent=71 // pred_check_branch
                %484 = sbr.rel target = $region98
              $region97: #{discriminator_forward.1} parent=71 // pred_region
                _
              $region98: #{discriminator_forward.1} parent=71 // pred_fallthru
                _
            $region72: #{discriminator_forward.1} parent=67 // pred_fallthru
              _
            // Predicated region
            $region73: #{discriminator_forward.1} parent=67 // pred_check
              _
            $region74: #{discriminator_forward.1} parent=67 // pred_check_branch
              %398 = sbr.rel target = $region76
            $region75: #{discriminator_forward.1} parent=67 // pred_region
              %s400 = ssub.s32 256, 1
              loop: start=0, step=1, limit=1
              $region77: #{discriminator_forward.1} parent=75 // loop_pre_header
                _
              $region78: #{discriminator_forward.1} parent=75 // loop_header
                %s402 = sphi 0, %s406
                %p403 = scmp.ge.s32.totalorder %s402, 1
                %s407 = sphi %s392, %s392
                %s408 = sphi %s388, %s388
              $region79: #{discriminator_forward.1} parent=75 // loop_header_branch
                %405 = sbr.rel (%p403) target = $region83
              $region80: #{discriminator_forward.1} parent=75 // loop_body
                %v409 = vld [vmem:[%s407] sm:%s400]
                %410 = vst [vmem:[%s408] sm:%s400] %v409
                %v411 = vld [vmem:[%s407 + $0x8] sm:%s400]
                %412 = vst [vmem:[%s408 + $0x8] sm:%s400] %v411
                %v413 = vld [vmem:[%s407 + $0x18] sm:%s400]
                %414 = vst [vmem:[%s408 + $0x10] sm:%s400] %v413
                %v415 = vld [vmem:[%s407 + $0x20] sm:%s400]
                %416 = vst [vmem:[%s408 + $0x18] sm:%s400] %v415
                %v417 = vld [vmem:[%s407 + $0x30] sm:%s400]
                %418 = vst [vmem:[%s408 + $0x20] sm:%s400] %v417
                %v419 = vld [vmem:[%s407 + $0x38] sm:%s400]
                %420 = vst [vmem:[%s408 + $0x28] sm:%s400] %v419
                %v421 = vld [vmem:[%s407 + $0x48] sm:%s400]
                %422 = vst [vmem:[%s408 + $0x30] sm:%s400] %v421
                %v423 = vld [vmem:[%s407 + $0x50] sm:%s400]
                %424 = vst [vmem:[%s408 + $0x38] sm:%s400] %v423
                %v425 = vld [vmem:[%s407 + $0x60] sm:%s400]
                %426 = vst [vmem:[%s408 + $0x40] sm:%s400] %v425
                %v427 = vld [vmem:[%s407 + $0x68] sm:%s400]
                %428 = vst [vmem:[%s408 + $0x48] sm:%s400] %v427
                %v429 = vld [vmem:[%s407 + $0x78] sm:%s400]
                %430 = vst [vmem:[%s408 + $0x50] sm:%s400] %v429
                %v431 = vld [vmem:[%s407 + $0x80] sm:%s400]
                %432 = vst [vmem:[%s408 + $0x58] sm:%s400] %v431
                %v433 = vld [vmem:[%s407 + $0x90] sm:%s400]
                %434 = vst [vmem:[%s408 + $0x60] sm:%s400] %v433
                %v435 = vld [vmem:[%s407 + $0x98] sm:%s400]
                %436 = vst [vmem:[%s408 + $0x68] sm:%s400] %v435
                %v437 = vld [vmem:[%s407 + $0xa8] sm:%s400]
                %438 = vst [vmem:[%s408 + $0x70] sm:%s400] %v437
                %v439 = vld [vmem:[%s407 + $0xb0] sm:%s400]
                %440 = vst [vmem:[%s408 + $0x78] sm:%s400] %v439
              $region81: #{discriminator_forward.1} parent=75 // loop_footer
                %s406 = sadd.s32 1, %s402
              $region82: #{discriminator_forward.1} parent=75 // loop_footer_branch
                %401 = sbr.rel target = $region78
              $region83: #{discriminator_forward.1} parent=75 // loop_exit
                _
            $region76: #{discriminator_forward.1} parent=67 // pred_fallthru
              _
          $region68: #{discriminator_forward.1} parent=63 // pred_fallthru
            _
          %485 = vnop
        $region64: #{discriminator_forward.1} parent=59 // pred_fallthru
          _
        // Predicated region
        $region99: #{discriminator_forward.1} parent=59 // pred_check
          %p486 = pneg %p67
        $region100: #{discriminator_forward.1} parent=59 // pred_check_branch
          %488 = sbr.rel (%p486) target = $region102
        $region101: #{discriminator_forward.1} parent=59 // pred_region
          %s489 = smul.u32 8, %s21
          %p490 = scmp.lt.s32.totalorder %s489, 15
          %s491 = scalar_select %p490, %s489, 15
          %s492 = smul.addr %s491, 8
          %s493 = scalar_lea.vmem %s1, %s492
          %s494 = smul.u32 8, %s21
        $region102: #{discriminator_forward.1} parent=59 // pred_fallthru
          _
      $region60: #{discriminator_forward.1} parent=5 // pred_fallthru
        _
      %p495 = scmp.le.s32.totalorder 1, %s21
      %p496 = scmp.lt.s32.totalorder %s21, 3
      %p497 = pnand %p495, %p496
      %p498 = pneg %p497
      // Predicated region
      $region103: #{discriminator_forward.1} parent=5 // pred_check
        _
      $region104: #{discriminator_forward.1} parent=5 // pred_check_branch
        %500 = sbr.rel (%p497) target = $region106
      $region105: #{discriminator_forward.1} parent=5 // pred_region
        %s501 = ssub.s32 %s21, 1
        %s502 = sand.u32 %s34, 1
        %s503 = sand.u32 %s34, 1
        %s504 = smul.addr %s503, 128
        %s505 = scalar_lea.vmem [#allocation3], %s504
        // Predicated region
        $region107: #{discriminator_forward.1} parent=105 // pred_check
          %p506 = pneg %p47
        $region108: #{discriminator_forward.1} parent=105 // pred_check_branch
          %508 = sbr.rel (%p506) target = $region110
        $region109: #{discriminator_forward.1} parent=105 // pred_region
          _
        $region110: #{discriminator_forward.1} parent=105 // pred_fallthru
          _
        %s509 = sand.u32 %s34, 1
        %s510 = sand.u32 %s34, 1
        %s511 = smul.addr %s510, 128
        %s512 = scalar_lea.vmem [#allocation3], %s511
        %p513 = pneg %p47
        %p514 = pneg %p44
        %s515 = smul.u32 8, %s26
        %p516 = scmp.lt.s32.totalorder %s515, 15
        %s517 = scalar_select %p516, %s515, 15
        %s518 = smul.addr %s517, 8
        %s519 = scalar_lea.vmem %s1, %s518
        %p520 = pneg %p73
        %p521 = pneg %p70
        %p522 = pneg %p94
        %p523 = pneg %p91
        %p524 = pneg %p115
        %p525 = pneg %p112
        %p526 = pneg %p136
        %p527 = pneg %p133
        %p528 = pneg %p157
        %p529 = pneg %p154
        %p530 = pneg %p178
        %p531 = pneg %p175
        %p532 = pneg %p199
        %p533 = pneg %p196
        %p534 = pneg %p220
        %p535 = pneg %p217
        %p536 = pneg %p241
        %p537 = pneg %p238
        %p538 = pneg %p262
        %p539 = pneg %p259
        %p540 = pneg %p283
        %p541 = pneg %p280
        %p542 = pneg %p304
        %p543 = pneg %p301
        %p544 = pneg %p330
        %p545 = pneg %p327
        %p546 = scmp.lt.s32.totalorder %s26, 1
        %s547 = scalar_select %p546, %s26, 1
        %s548 = smul.addr %s547, 8
        %s549 = scalar_lea.vmem %s13, %s548
        %s550 = smul.u32 8, %s26
        %s551 = smul.u32 8, %s26
        %p552 = scmp.lt.s32.totalorder %s551, 15
        %s553 = scalar_select %p552, %s551, 15
        %s554 = smul.addr %s553, 8
        %s555 = scalar_lea.vmem %s1, %s554
        %s556 = smul.u32 8, %s26
        %p557 = scmp.lt.s32.totalorder %s26, 1
        %s558 = scalar_select %p557, %s26, 1
        %s559 = smul.addr %s558, 8
        %s560 = scalar_lea.vmem %s13, %s559
        %v562 = vld [vmem:[%s505] sm:$0xff]
        %v563 = vld [vmem:[%s505 + $0x8] sm:$0xff]
        %v564 = vld [vmem:[%s505 + $0x10] sm:$0xff]
        %v565 = vld [vmem:[%s505 + $0x18] sm:$0xff]
        %v566 = vld [vmem:[%s505 + $0x20] sm:$0xff]
        %v567 = vld [vmem:[%s505 + $0x28] sm:$0xff]
        %v568 = vld [vmem:[%s505 + $0x30] sm:$0xff]
        %v569 = vld [vmem:[%s505 + $0x38] sm:$0xff]
        %v570 = vld [vmem:[%s505 + $0x40] sm:$0xff]
        %v571 = vld [vmem:[%s505 + $0x48] sm:$0xff]
        %v572 = vld [vmem:[%s505 + $0x50] sm:$0xff]
        %v573 = vld [vmem:[%s505 + $0x58] sm:$0xff]
        %v574 = vld [vmem:[%s505 + $0x60] sm:$0xff]
        %v575 = vld [vmem:[%s505 + $0x68] sm:$0xff]
        %v576 = vld [vmem:[%s505 + $0x70] sm:$0xff]
        %v577 = vld [vmem:[%s505 + $0x78] sm:$0xff]
        %586 = vrot.lane.b32.xlu0 %v563, 8
        %v587 = vpop.permute.xlu0 %586
        %588 = vrot.lane.b32.xlu0 %v565, 8
        %v589 = vpop.permute.xlu0 %588
        %590 = vrot.lane.b32.xlu0 %v567, 8
        %v591 = vpop.permute.xlu0 %590
        %592 = vrot.lane.b32.xlu0 %v569, 8
        %v593 = vpop.permute.xlu0 %592
        %594 = vrot.lane.b32.xlu0 %v571, 8
        %v595 = vpop.permute.xlu0 %594
        %596 = vrot.lane.b32.xlu0 %v573, 8
        %v597 = vpop.permute.xlu0 %596
        %598 = vrot.lane.b32.xlu0 %v575, 8
        %v599 = vpop.permute.xlu0 %598
        %600 = vrot.lane.b32.xlu0 %v577, 8
        %v601 = vpop.permute.xlu0 %600
        %vm610 = vcmask 64512
        %v611 = vsel %vm610, %v562, %v587
        %v612 = vsel %vm610, %v564, %v589
        %v613 = vsel %vm610, %v566, %v591
        %v614 = vsel %vm610, %v568, %v593
        %v615 = vsel %vm610, %v570, %v595
        %v616 = vsel %vm610, %v572, %v597
        %v617 = vsel %vm610, %v574, %v599
        %v618 = vsel %vm610, %v576, %v601
        %v619 = vpack.c.bf16 %v611, %v611
        %v620 = vpack.c.bf16 %v612, %v612
        %v621 = vpack.c.bf16 %v613, %v613
        %v622 = vpack.c.bf16 %v614, %v614
        %v623 = vpack.c.bf16 %v615, %v615
        %v624 = vpack.c.bf16 %v616, %v616
        %v625 = vpack.c.bf16 %v617, %v617
        %v626 = vpack.c.bf16 %v618, %v618
        %v627 = vld [vmem:[%s555] sm:$0xff]
        %v628 = vld [vmem:[%s555 + $0x8] sm:$0xff]
        %v629 = vld [vmem:[%s555 + $0x10] sm:$0xff]
        %v630 = vld [vmem:[%s555 + $0x18] sm:$0xff]
        %v631 = vld [vmem:[%s555 + $0x20] sm:$0xff]
        %v632 = vld [vmem:[%s555 + $0x28] sm:$0xff]
        %v633 = vld [vmem:[%s555 + $0x30] sm:$0xff]
        %v634 = vld [vmem:[%s555 + $0x38] sm:$0xff]
        %v635 = vpack.c.bf16 %v628, %v627
        %v636 = vpack.c.bf16 %v630, %v629
        %v637 = vpack.c.bf16 %v632, %v631
        %v638 = vpack.c.bf16 %v634, %v633
        %v639 = vld [vmem:[%s2] sm:$0xf]
        %v640 = vld [vmem:[%s3] sm:$0x1]
        %v642 = vperm.slane %v640, 0
        %v645 = vsel %vm610, %v635, 0
        %v648 = vsel %vm610, %v636, 0
        %v651 = vsel %vm610, %v637, 0
        %v654 = vsel %vm610, %v638, 0
        %vm656 = vcmask 1043456
        %v658 = vsel %vm656, %v639, 0
        %660 = vmatpush.bf16.msra.mxu0 0
        %661 = vmatpush.bf16.msra.mxu0 0
        %662 = vmatpush.bf16.msra.mxu0 0
        %663 = vmatpush.bf16.msra.mxu0 0
        %664 = vmatpush.bf16.msra.mxu0 0
        %665 = vmatpush.bf16.msra.mxu0 0
        %666 = vmatpush.bf16.msra.mxu0 0
        %667 = vmatpush.bf16.msra.mxu0 %v658
        %668 = vmatmul.bf16.gmra.mxu0 %v645
        %v669 = vpop.f32.mrf.mxu0
        %v670 = vadd.f32 %v642, %v669
        %v671 = vpop.f32.mrf.mxu0
        %v672 = vadd.f32 %v642, %v671
        %673 = vmatmul.bf16.gmra.mxu0 %v648
        %v674 = vpop.f32.mrf.mxu0
        %v675 = vadd.f32 %v642, %v674
        %v676 = vpop.f32.mrf.mxu0
        %v677 = vadd.f32 %v642, %v676
        %678 = vmatmul.bf16.gmra.mxu0 %v651
        %v679 = vpop.f32.mrf.mxu0
        %v680 = vadd.f32 %v642, %v679
        %v681 = vpop.f32.mrf.mxu0
        %v682 = vadd.f32 %v642, %v681
        %683 = vmatmul.bf16.gmra.mxu0 %v654
        %v684 = vpop.f32.mrf.mxu0
        %v685 = vadd.f32 %v642, %v684
        %v686 = vpop.f32.mrf.mxu0
        %v687 = vadd.f32 %v642, %v686
        %688 = vdwg.mxu0
        %697 = vrot.lane.b32.xlu0 %v670, 112
        %v698 = vpop.permute.xlu0 %697
        %699 = vrot.lane.b32.xlu0 %v672, 112
        %v700 = vpop.permute.xlu0 %699
        %701 = vrot.lane.b32.xlu0 %v675, 112
        %v702 = vpop.permute.xlu0 %701
        %703 = vrot.lane.b32.xlu0 %v677, 112
        %v704 = vpop.permute.xlu0 %703
        %705 = vrot.lane.b32.xlu0 %v680, 112
        %v706 = vpop.permute.xlu0 %705
        %707 = vrot.lane.b32.xlu0 %v682, 112
        %v708 = vpop.permute.xlu0 %707
        %709 = vrot.lane.b32.xlu0 %v685, 112
        %v710 = vpop.permute.xlu0 %709
        %711 = vrot.lane.b32.xlu0 %v687, 112
        %v712 = vpop.permute.xlu0 %711
        %v721 = vpack.c.bf16 %v670, %v670
        %v722 = vpack.c.bf16 %v698, %v698
        %v723 = vpack.c.bf16 %v672, %v672
        %v724 = vpack.c.bf16 %v700, %v700
        %v725 = vpack.c.bf16 %v675, %v675
        %v726 = vpack.c.bf16 %v702, %v702
        %v727 = vpack.c.bf16 %v677, %v677
        %v728 = vpack.c.bf16 %v704, %v704
        %v729 = vpack.c.bf16 %v680, %v680
        %v730 = vpack.c.bf16 %v706, %v706
        %v731 = vpack.c.bf16 %v682, %v682
        %v732 = vpack.c.bf16 %v708, %v708
        %v733 = vpack.c.bf16 %v685, %v685
        %v734 = vpack.c.bf16 %v710, %v710
        %v735 = vpack.c.bf16 %v687, %v687
        %v736 = vpack.c.bf16 %v712, %v712
        %v739 = vunpack.c.l.b16 %v721
        %v740 = vunpack.c.l.b16 %v722
        %v741 = vpack.c.b16 %v740, %v739
        %vm743 = vcmask 130048
        %v745 = vsel %vm743, %v619, 0
        %747 = vmatpush.bf16.msra.mxu0 0
        %748 = vmatpush.bf16.msra.mxu0 0
        %749 = vmatpush.bf16.msra.mxu0 0
        %750 = vmatpush.bf16.msra.mxu0 0
        %751 = vmatpush.bf16.msra.mxu0 0
        %752 = vmatpush.bf16.msra.mxu0 0
        %753 = vmatpush.bf16.msra.mxu0 0
        %754 = vmatpush.bf16.msra.mxu0 %v741
        %755 = vmatmul.bf16.gmra.mxu0 %v745
        %v756 = vpop.f32.mrf.mxu0
        %v757 = vadd.f32 0.0, %v756
        %v758 = vpop.f32.mrf.mxu0
        %759 = vdwg.mxu0
        %v762 = vunpack.c.l.b16 %v723
        %v763 = vunpack.c.l.b16 %v724
        %v764 = vpack.c.b16 %v763, %v762
        %v767 = vsel %vm743, %v620, 0
        %769 = vmatpush.bf16.msra.mxu0 0
        %770 = vmatpush.bf16.msra.mxu0 0
        %771 = vmatpush.bf16.msra.mxu0 0
        %772 = vmatpush.bf16.msra.mxu0 0
        %773 = vmatpush.bf16.msra.mxu0 0
        %774 = vmatpush.bf16.msra.mxu0 0
        %775 = vmatpush.bf16.msra.mxu0 0
        %776 = vmatpush.bf16.msra.mxu0 %v764
        %777 = vmatmul.bf16.gmra.mxu0 %v767
        %v778 = vpop.f32.mrf.mxu0
        %v779 = vadd.f32 0.0, %v778
        %v780 = vpop.f32.mrf.mxu0
        %781 = vdwg.mxu0
        %v784 = vunpack.c.l.b16 %v725
        %v785 = vunpack.c.l.b16 %v726
        %v786 = vpack.c.b16 %v785, %v784
        %v789 = vsel %vm743, %v621, 0
        %791 = vmatpush.bf16.msra.mxu0 0
        %792 = vmatpush.bf16.msra.mxu0 0
        %793 = vmatpush.bf16.msra.mxu0 0
        %794 = vmatpush.bf16.msra.mxu0 0
        %795 = vmatpush.bf16.msra.mxu0 0
        %796 = vmatpush.bf16.msra.mxu0 0
        %797 = vmatpush.bf16.msra.mxu0 0
        %798 = vmatpush.bf16.msra.mxu0 %v786
        %799 = vmatmul.bf16.gmra.mxu0 %v789
        %v800 = vpop.f32.mrf.mxu0
        %v801 = vadd.f32 0.0, %v800
        %v802 = vpop.f32.mrf.mxu0
        %803 = vdwg.mxu0
        %v806 = vunpack.c.l.b16 %v727
        %v807 = vunpack.c.l.b16 %v728
        %v808 = vpack.c.b16 %v807, %v806
        %v811 = vsel %vm743, %v622, 0
        %813 = vmatpush.bf16.msra.mxu0 0
        %814 = vmatpush.bf16.msra.mxu0 0
        %815 = vmatpush.bf16.msra.mxu0 0
        %816 = vmatpush.bf16.msra.mxu0 0
        %817 = vmatpush.bf16.msra.mxu0 0
        %818 = vmatpush.bf16.msra.mxu0 0
        %819 = vmatpush.bf16.msra.mxu0 0
        %820 = vmatpush.bf16.msra.mxu0 %v808
        %821 = vmatmul.bf16.gmra.mxu0 %v811
        %v822 = vpop.f32.mrf.mxu0
        %v823 = vadd.f32 0.0, %v822
        %v824 = vpop.f32.mrf.mxu0
        %825 = vdwg.mxu0
        %v828 = vunpack.c.l.b16 %v729
        %v829 = vunpack.c.l.b16 %v730
        %v830 = vpack.c.b16 %v829, %v828
        %v833 = vsel %vm743, %v623, 0
        %835 = vmatpush.bf16.msra.mxu0 0
        %836 = vmatpush.bf16.msra.mxu0 0
        %837 = vmatpush.bf16.msra.mxu0 0
        %838 = vmatpush.bf16.msra.mxu0 0
        %839 = vmatpush.bf16.msra.mxu0 0
        %840 = vmatpush.bf16.msra.mxu0 0
        %841 = vmatpush.bf16.msra.mxu0 0
        %842 = vmatpush.bf16.msra.mxu0 %v830
        %843 = vmatmul.bf16.gmra.mxu0 %v833
        %v844 = vpop.f32.mrf.mxu0
        %v845 = vadd.f32 0.0, %v844
        %v846 = vpop.f32.mrf.mxu0
        %847 = vdwg.mxu0
        %v850 = vunpack.c.l.b16 %v731
        %v851 = vunpack.c.l.b16 %v732
        %v852 = vpack.c.b16 %v851, %v850
        %v855 = vsel %vm743, %v624, 0
        %857 = vmatpush.bf16.msra.mxu0 0
        %858 = vmatpush.bf16.msra.mxu0 0
        %859 = vmatpush.bf16.msra.mxu0 0
        %860 = vmatpush.bf16.msra.mxu0 0
        %861 = vmatpush.bf16.msra.mxu0 0
        %862 = vmatpush.bf16.msra.mxu0 0
        %863 = vmatpush.bf16.msra.mxu0 0
        %864 = vmatpush.bf16.msra.mxu0 %v852
        %865 = vmatmul.bf16.gmra.mxu0 %v855
        %v866 = vpop.f32.mrf.mxu0
        %v867 = vadd.f32 0.0, %v866
        %v868 = vpop.f32.mrf.mxu0
        %869 = vdwg.mxu0
        %v872 = vunpack.c.l.b16 %v733
        %v873 = vunpack.c.l.b16 %v734
        %v874 = vpack.c.b16 %v873, %v872
        %v877 = vsel %vm743, %v625, 0
        %879 = vmatpush.bf16.msra.mxu0 0
        %880 = vmatpush.bf16.msra.mxu0 0
        %881 = vmatpush.bf16.msra.mxu0 0
        %882 = vmatpush.bf16.msra.mxu0 0
        %883 = vmatpush.bf16.msra.mxu0 0
        %884 = vmatpush.bf16.msra.mxu0 0
        %885 = vmatpush.bf16.msra.mxu0 0
        %886 = vmatpush.bf16.msra.mxu0 %v874
        %887 = vmatmul.bf16.gmra.mxu0 %v877
        %v888 = vpop.f32.mrf.mxu0
        %v889 = vadd.f32 0.0, %v888
        %v890 = vpop.f32.mrf.mxu0
        %891 = vdwg.mxu0
        %v894 = vunpack.c.l.b16 %v735
        %v895 = vunpack.c.l.b16 %v736
        %v896 = vpack.c.b16 %v895, %v894
        %v899 = vsel %vm743, %v626, 0
        %901 = vmatpush.bf16.msra.mxu0 0
        %902 = vmatpush.bf16.msra.mxu0 0
        %903 = vmatpush.bf16.msra.mxu0 0
        %904 = vmatpush.bf16.msra.mxu0 0
        %905 = vmatpush.bf16.msra.mxu0 0
        %906 = vmatpush.bf16.msra.mxu0 0
        %907 = vmatpush.bf16.msra.mxu0 0
        %908 = vmatpush.bf16.msra.mxu0 %v896
        %909 = vmatmul.bf16.gmra.mxu0 %v899
        %v910 = vpop.f32.mrf.mxu0
        %v911 = vadd.f32 0.0, %v910
        %v912 = vpop.f32.mrf.mxu0
        %913 = vdwg.mxu0
        %922 = vrot.lane.b32.xlu0 %v757, 32
        %v923 = vpop.permute.xlu0 %922
        %924 = vrot.lane.b32.xlu0 %v779, 32
        %v925 = vpop.permute.xlu0 %924
        %926 = vrot.lane.b32.xlu0 %v801, 32
        %v927 = vpop.permute.xlu0 %926
        %928 = vrot.lane.b32.xlu0 %v823, 32
        %v929 = vpop.permute.xlu0 %928
        %930 = vrot.lane.b32.xlu0 %v845, 32
        %v931 = vpop.permute.xlu0 %930
        %932 = vrot.lane.b32.xlu0 %v867, 32
        %v933 = vpop.permute.xlu0 %932
        %934 = vrot.lane.b32.xlu0 %v889, 32
        %v935 = vpop.permute.xlu0 %934
        %936 = vrot.lane.b32.xlu0 %v911, 32
        %v937 = vpop.permute.xlu0 %936
        %v946 = vadd.f32 %v670, %v923
        %v947 = vadd.f32 %v672, %v925
        %v948 = vadd.f32 %v675, %v927
        %v949 = vadd.f32 %v677, %v929
        %v950 = vadd.f32 %v680, %v931
        %v951 = vadd.f32 %v682, %v933
        %v952 = vadd.f32 %v685, %v935
        %v953 = vadd.f32 %v687, %v937
        %v954 = vtanh.pop %v946
        %v955 = vtanh.pop %v947
        %v956 = vtanh.pop %v948
        %v957 = vtanh.pop %v949
        %v958 = vtanh.pop %v950
        %v959 = vtanh.pop %v951
        %v960 = vtanh.pop %v952
        %v961 = vtanh.pop %v953
        %v962 = vpack.c.bf16 %v955, %v954
        %v963 = vpack.c.bf16 %v957, %v956
        %v964 = vpack.c.bf16 %v959, %v958
        %v965 = vpack.c.bf16 %v961, %v960
        %v966 = vld [vmem:[%s4] sm:$0xf]
        %v967 = vld [vmem:[%s4 + $0x4] sm:$0xf]
        %v968 = vld [vmem:[%s5] sm:$0xf]
        %v969 = vld [vmem:[%s6] sm:$0x1]
        %v971 = vsel %vm656, %v968, 0
        %973 = vmatpush.bf16.msra.mxu0 0
        %974 = vmatpush.bf16.msra.mxu0 0
        %975 = vmatpush.bf16.msra.mxu0 0
        %976 = vmatpush.bf16.msra.mxu0 0
        %977 = vmatpush.bf16.msra.mxu0 0
        %978 = vmatpush.bf16.msra.mxu0 0
        %979 = vmatpush.bf16.msra.mxu0 0
        %980 = vmatpush.bf16.msra.mxu0 %v971
        %981 = vmatmul.bf16.gmra.mxu0 %v645
        %v982 = vpop.f32.mrf.mxu0
        %v983 = vadd.f32 0.0, %v982
        %v984 = vpop.f32.mrf.mxu0
        %v985 = vadd.f32 0.0, %v984
        %986 = vmatmul.bf16.gmra.mxu0 %v648
        %v987 = vpop.f32.mrf.mxu0
        %v988 = vadd.f32 0.0, %v987
        %v989 = vpop.f32.mrf.mxu0
        %v990 = vadd.f32 0.0, %v989
        %991 = vmatmul.bf16.gmra.mxu0 %v651
        %v992 = vpop.f32.mrf.mxu0
        %v993 = vadd.f32 0.0, %v992
        %v994 = vpop.f32.mrf.mxu0
        %v995 = vadd.f32 0.0, %v994
        %996 = vmatmul.bf16.gmra.mxu0 %v654
        %v997 = vpop.f32.mrf.mxu0
        %v998 = vadd.f32 0.0, %v997
        %v999 = vpop.f32.mrf.mxu0
        %v1000 = vadd.f32 0.0, %v999
        %1001 = vdwg.mxu0
        %1006 = vrot.lane.b32.xlu0 %v962, 96
        %v1007 = vpop.permute.xlu0 %1006
        %1008 = vrot.lane.b32.xlu0 %v963, 96
        %v1009 = vpop.permute.xlu0 %1008
        %1010 = vrot.lane.b32.xlu0 %v964, 96
        %v1011 = vpop.permute.xlu0 %1010
        %1012 = vrot.lane.b32.xlu0 %v965, 96
        %v1013 = vpop.permute.xlu0 %1012
        %v1016 = vunpack.c.l.b16 %v966
        %v1017 = vunpack.c.l.b16 %v967
        %v1018 = vpack.c.b16 %v1017, %v1016
        %v1021 = vsel %vm743, %v1007, 0
        %v1024 = vsel %vm743, %v1009, 0
        %v1027 = vsel %vm743, %v1011, 0
        %v1030 = vsel %vm743, %v1013, 0
        %1032 = vmatpush.bf16.msra.mxu0 0
        %1033 = vmatpush.bf16.msra.mxu0 0
        %1034 = vmatpush.bf16.msra.mxu0 0
        %1035 = vmatpush.bf16.msra.mxu0 0
        %1036 = vmatpush.bf16.msra.mxu0 0
        %1037 = vmatpush.bf16.msra.mxu0 0
        %1038 = vmatpush.bf16.msra.mxu0 0
        %1039 = vmatpush.bf16.msra.mxu0 %v1018
        %1040 = vmatmul.bf16.gmra.mxu0 %v1021
        %v1041 = vpop.f32.mrf.mxu0
        %v1042 = vadd.f32 %v983, %v1041
        %v1043 = vpop.f32.mrf.mxu0
        %v1044 = vadd.f32 %v985, %v1043
        %1045 = vmatmul.bf16.gmra.mxu0 %v1024
        %v1046 = vpop.f32.mrf.mxu0
        %v1047 = vadd.f32 %v988, %v1046
        %v1048 = vpop.f32.mrf.mxu0
        %v1049 = vadd.f32 %v990, %v1048
        %1050 = vmatmul.bf16.gmra.mxu0 %v1027
        %v1051 = vpop.f32.mrf.mxu0
        %v1052 = vadd.f32 %v993, %v1051
        %v1053 = vpop.f32.mrf.mxu0
        %v1054 = vadd.f32 %v995, %v1053
        %1055 = vmatmul.bf16.gmra.mxu0 %v1030
        %v1056 = vpop.f32.mrf.mxu0
        %v1057 = vadd.f32 %v998, %v1056
        %v1058 = vpop.f32.mrf.mxu0
        %v1059 = vadd.f32 %v1000, %v1058
        %1060 = vdwg.mxu0
        %v1062 = vperm.slane %v969, 0
        %v1064 = vadd.f32 %v1042, %v1062
        %v1065 = vadd.f32 %v1044, %v1062
        %v1066 = vadd.f32 %v1047, %v1062
        %v1067 = vadd.f32 %v1049, %v1062
        %v1068 = vadd.f32 %v1052, %v1062
        %v1069 = vadd.f32 %v1054, %v1062
        %v1070 = vadd.f32 %v1057, %v1062
        %v1071 = vadd.f32 %v1059, %v1062
        %1080 = vrot.lane.b32.xlu0 %v1064, 96
        %v1081 = vpop.permute.xlu0 %1080
        %1082 = vrot.lane.b32.xlu0 %v1065, 96
        %v1083 = vpop.permute.xlu0 %1082
        %1084 = vrot.lane.b32.xlu0 %v1066, 96
        %v1085 = vpop.permute.xlu0 %1084
        %1086 = vrot.lane.b32.xlu0 %v1067, 96
        %v1087 = vpop.permute.xlu0 %1086
        %1088 = vrot.lane.b32.xlu0 %v1068, 96
        %v1089 = vpop.permute.xlu0 %1088
        %1090 = vrot.lane.b32.xlu0 %v1069, 96
        %v1091 = vpop.permute.xlu0 %1090
        %1092 = vrot.lane.b32.xlu0 %v1070, 96
        %v1093 = vpop.permute.xlu0 %1092
        %1094 = vrot.lane.b32.xlu0 %v1071, 96
        %v1095 = vpop.permute.xlu0 %1094
        %v1104 = vpack.c.bf16 %v1064, %v1064
        %v1105 = vpack.c.bf16 %v1081, %v1081
        %v1106 = vpack.c.bf16 %v1065, %v1065
        %v1107 = vpack.c.bf16 %v1083, %v1083
        %v1108 = vpack.c.bf16 %v1066, %v1066
        %v1109 = vpack.c.bf16 %v1085, %v1085
        %v1110 = vpack.c.bf16 %v1067, %v1067
        %v1111 = vpack.c.bf16 %v1087, %v1087
        %v1112 = vpack.c.bf16 %v1068, %v1068
        %v1113 = vpack.c.bf16 %v1089, %v1089
        %v1114 = vpack.c.bf16 %v1069, %v1069
        %v1115 = vpack.c.bf16 %v1091, %v1091
        %v1116 = vpack.c.bf16 %v1070, %v1070
        %v1117 = vpack.c.bf16 %v1093, %v1093
        %v1118 = vpack.c.bf16 %v1071, %v1071
        %v1119 = vpack.c.bf16 %v1095, %v1095
        %v1122 = vunpack.c.l.b16 %v1104
        %v1123 = vunpack.c.l.b16 %v1105
        %v1124 = vpack.c.b16 %v1123, %v1122
        %1126 = vmatpush.bf16.msra.mxu0 0
        %1127 = vmatpush.bf16.msra.mxu0 0
        %1128 = vmatpush.bf16.msra.mxu0 0
        %1129 = vmatpush.bf16.msra.mxu0 0
        %1130 = vmatpush.bf16.msra.mxu0 0
        %1131 = vmatpush.bf16.msra.mxu0 0
        %1132 = vmatpush.bf16.msra.mxu0 0
        %1133 = vmatpush.bf16.msra.mxu0 %v1124
        %1134 = vmatmul.bf16.gmra.mxu0 %v745
        %v1135 = vpop.f32.mrf.mxu0
        %v1136 = vadd.f32 0.0, %v1135
        %v1137 = vpop.f32.mrf.mxu0
        %1138 = vdwg.mxu0
        %v1141 = vunpack.c.l.b16 %v1106
        %v1142 = vunpack.c.l.b16 %v1107
        %v1143 = vpack.c.b16 %v1142, %v1141
        %1145 = vmatpush.bf16.msra.mxu0 0
        %1146 = vmatpush.bf16.msra.mxu0 0
        %1147 = vmatpush.bf16.msra.mxu0 0
        %1148 = vmatpush.bf16.msra.mxu0 0
        %1149 = vmatpush.bf16.msra.mxu0 0
        %1150 = vmatpush.bf16.msra.mxu0 0
        %1151 = vmatpush.bf16.msra.mxu0 0
        %1152 = vmatpush.bf16.msra.mxu0 %v1143
        %1153 = vmatmul.bf16.gmra.mxu0 %v767
        %v1154 = vpop.f32.mrf.mxu0
        %v1155 = vadd.f32 0.0, %v1154
        %v1156 = vpop.f32.mrf.mxu0
        %1157 = vdwg.mxu0
        %v1160 = vunpack.c.l.b16 %v1108
        %v1161 = vunpack.c.l.b16 %v1109
        %v1162 = vpack.c.b16 %v1161, %v1160
        %1164 = vmatpush.bf16.msra.mxu0 0
        %1165 = vmatpush.bf16.msra.mxu0 0
        %1166 = vmatpush.bf16.msra.mxu0 0
        %1167 = vmatpush.bf16.msra.mxu0 0
        %1168 = vmatpush.bf16.msra.mxu0 0
        %1169 = vmatpush.bf16.msra.mxu0 0
        %1170 = vmatpush.bf16.msra.mxu0 0
        %1171 = vmatpush.bf16.msra.mxu0 %v1162
        %1172 = vmatmul.bf16.gmra.mxu0 %v789
        %v1173 = vpop.f32.mrf.mxu0
        %v1174 = vadd.f32 0.0, %v1173
        %v1175 = vpop.f32.mrf.mxu0
        %1176 = vdwg.mxu0
        %v1179 = vunpack.c.l.b16 %v1110
        %v1180 = vunpack.c.l.b16 %v1111
        %v1181 = vpack.c.b16 %v1180, %v1179
        %1183 = vmatpush.bf16.msra.mxu0 0
        %1184 = vmatpush.bf16.msra.mxu0 0
        %1185 = vmatpush.bf16.msra.mxu0 0
        %1186 = vmatpush.bf16.msra.mxu0 0
        %1187 = vmatpush.bf16.msra.mxu0 0
        %1188 = vmatpush.bf16.msra.mxu0 0
        %1189 = vmatpush.bf16.msra.mxu0 0
        %1190 = vmatpush.bf16.msra.mxu0 %v1181
        %1191 = vmatmul.bf16.gmra.mxu0 %v811
        %v1192 = vpop.f32.mrf.mxu0
        %v1193 = vadd.f32 0.0, %v1192
        %v1194 = vpop.f32.mrf.mxu0
        %1195 = vdwg.mxu0
        %v1198 = vunpack.c.l.b16 %v1112
        %v1199 = vunpack.c.l.b16 %v1113
        %v1200 = vpack.c.b16 %v1199, %v1198
        %1202 = vmatpush.bf16.msra.mxu0 0
        %1203 = vmatpush.bf16.msra.mxu0 0
        %1204 = vmatpush.bf16.msra.mxu0 0
        %1205 = vmatpush.bf16.msra.mxu0 0
        %1206 = vmatpush.bf16.msra.mxu0 0
        %1207 = vmatpush.bf16.msra.mxu0 0
        %1208 = vmatpush.bf16.msra.mxu0 0
        %1209 = vmatpush.bf16.msra.mxu0 %v1200
        %1210 = vmatmul.bf16.gmra.mxu0 %v833
        %v1211 = vpop.f32.mrf.mxu0
        %v1212 = vadd.f32 0.0, %v1211
        %v1213 = vpop.f32.mrf.mxu0
        %1214 = vdwg.mxu0
        %v1217 = vunpack.c.l.b16 %v1114
        %v1218 = vunpack.c.l.b16 %v1115
        %v1219 = vpack.c.b16 %v1218, %v1217
        %1221 = vmatpush.bf16.msra.mxu0 0
        %1222 = vmatpush.bf16.msra.mxu0 0
        %1223 = vmatpush.bf16.msra.mxu0 0
        %1224 = vmatpush.bf16.msra.mxu0 0
        %1225 = vmatpush.bf16.msra.mxu0 0
        %1226 = vmatpush.bf16.msra.mxu0 0
        %1227 = vmatpush.bf16.msra.mxu0 0
        %1228 = vmatpush.bf16.msra.mxu0 %v1219
        %1229 = vmatmul.bf16.gmra.mxu0 %v855
        %v1230 = vpop.f32.mrf.mxu0
        %v1231 = vadd.f32 0.0, %v1230
        %v1232 = vpop.f32.mrf.mxu0
        %1233 = vdwg.mxu0
        %v1236 = vunpack.c.l.b16 %v1116
        %v1237 = vunpack.c.l.b16 %v1117
        %v1238 = vpack.c.b16 %v1237, %v1236
        %1240 = vmatpush.bf16.msra.mxu0 0
        %1241 = vmatpush.bf16.msra.mxu0 0
        %1242 = vmatpush.bf16.msra.mxu0 0
        %1243 = vmatpush.bf16.msra.mxu0 0
        %1244 = vmatpush.bf16.msra.mxu0 0
        %1245 = vmatpush.bf16.msra.mxu0 0
        %1246 = vmatpush.bf16.msra.mxu0 0
        %1247 = vmatpush.bf16.msra.mxu0 %v1238
        %1248 = vmatmul.bf16.gmra.mxu0 %v877
        %v1249 = vpop.f32.mrf.mxu0
        %v1250 = vadd.f32 0.0, %v1249
        %v1251 = vpop.f32.mrf.mxu0
        %1252 = vdwg.mxu0
        %v1255 = vunpack.c.l.b16 %v1118
        %v1256 = vunpack.c.l.b16 %v1119
        %v1257 = vpack.c.b16 %v1256, %v1255
        %1259 = vmatpush.bf16.msra.mxu0 0
        %1260 = vmatpush.bf16.msra.mxu0 0
        %1261 = vmatpush.bf16.msra.mxu0 0
        %1262 = vmatpush.bf16.msra.mxu0 0
        %1263 = vmatpush.bf16.msra.mxu0 0
        %1264 = vmatpush.bf16.msra.mxu0 0
        %1265 = vmatpush.bf16.msra.mxu0 0
        %1266 = vmatpush.bf16.msra.mxu0 %v1257
        %1267 = vmatmul.bf16.gmra.mxu0 %v899
        %v1268 = vpop.f32.mrf.mxu0
        %v1269 = vadd.f32 0.0, %v1268
        %v1270 = vpop.f32.mrf.mxu0
        %1271 = vdwg.mxu0
        %1280 = vrot.lane.b32.xlu0 %v1136, 64
        %v1281 = vpop.permute.xlu0 %1280
        %1282 = vrot.lane.b32.xlu0 %v1155, 64
        %v1283 = vpop.permute.xlu0 %1282
        %1284 = vrot.lane.b32.xlu0 %v1174, 64
        %v1285 = vpop.permute.xlu0 %1284
        %1286 = vrot.lane.b32.xlu0 %v1193, 64
        %v1287 = vpop.permute.xlu0 %1286
        %1288 = vrot.lane.b32.xlu0 %v1212, 64
        %v1289 = vpop.permute.xlu0 %1288
        %1290 = vrot.lane.b32.xlu0 %v1231, 64
        %v1291 = vpop.permute.xlu0 %1290
        %1292 = vrot.lane.b32.xlu0 %v1250, 64
        %v1293 = vpop.permute.xlu0 %1292
        %1294 = vrot.lane.b32.xlu0 %v1269, 64
        %v1295 = vpop.permute.xlu0 %1294
        %v1304 = vadd.f32 %v1064, %v1281
        %v1305 = vadd.f32 %v1065, %v1283
        %v1306 = vadd.f32 %v1066, %v1285
        %v1307 = vadd.f32 %v1067, %v1287
        %v1308 = vadd.f32 %v1068, %v1289
        %v1309 = vadd.f32 %v1069, %v1291
        %v1310 = vadd.f32 %v1070, %v1293
        %v1311 = vadd.f32 %v1071, %v1295
        %v1312 = vtanh.pop %v1304
        %v1313 = vtanh.pop %v1305
        %v1314 = vtanh.pop %v1306
        %v1315 = vtanh.pop %v1307
        %v1316 = vtanh.pop %v1308
        %v1317 = vtanh.pop %v1309
        %v1318 = vtanh.pop %v1310
        %v1319 = vtanh.pop %v1311
        %v1320 = vpack.c.bf16 %v1313, %v1312
        %v1321 = vpack.c.bf16 %v1315, %v1314
        %v1322 = vpack.c.bf16 %v1317, %v1316
        %v1323 = vpack.c.bf16 %v1319, %v1318
        %v1324 = vld [vmem:[%s7] sm:$0xf]
        %v1325 = vld [vmem:[%s7 + $0x4] sm:$0xf]
        %v1326 = vld [vmem:[%s7 + $0x8] sm:$0xf]
        %v1327 = vld [vmem:[%s7 + $0xc] sm:$0xf]
        %v1328 = vld [vmem:[%s8] sm:$0x1]
        %v1329 = vld [vmem:[%s9] sm:$0xf]
        %v1330 = vld [vmem:[%s9 + $0x4] sm:$0xf]
        %v1331 = vld [vmem:[%s9 + $0x8] sm:$0xf]
        %v1332 = vld [vmem:[%s9 + $0xc] sm:$0xf]
        %v1333 = vld [vmem:[%s10] sm:$0x1]
        %v1334 = vld [vmem:[%s11] sm:$0xf]
        %v1335 = vld [vmem:[%s11 + $0x4] sm:$0xf]
        %v1336 = vld [vmem:[#allocation2] sm:$0x1]
        %v1338 = vperm.slane %v1328, 0
        %1344 = vrot.lane.b32.xlu0 %v1320, 64
        %v1345 = vpop.permute.xlu0 %1344
        %1346 = vrot.lane.b32.xlu0 %v1321, 64
        %v1347 = vpop.permute.xlu0 %1346
        %1348 = vrot.lane.b32.xlu0 %v1322, 64
        %v1349 = vpop.permute.xlu0 %1348
        %1350 = vrot.lane.b32.xlu0 %v1323, 64
        %v1351 = vpop.permute.xlu0 %1350
        %v1356 = vunpack.c.l.b16 %v1324
        %v1357 = vunpack.c.l.b16 %v1325
        %v1358 = vunpack.c.l.b16 %v1326
        %v1359 = vunpack.c.l.b16 %v1327
        %v1360 = vpack.c.b16 %v1357, %v1356
        %v1361 = vpack.c.b16 %v1359, %v1358
        %vm1364 = vcmask 261120
        %v1366 = vsel %vm1364, %v1345, 0
        %v1369 = vsel %vm1364, %v1347, 0
        %v1372 = vsel %vm1364, %v1349, 0
        %v1375 = vsel %vm1364, %v1351, 0
        %1377 = vmatpush.bf16.msra.mxu0 0
        %1378 = vmatpush.bf16.msra.mxu0 0
        %1379 = vmatpush.bf16.msra.mxu0 0
        %1380 = vmatpush.bf16.msra.mxu0 0
        %1381 = vmatpush.bf16.msra.mxu0 0
        %1382 = vmatpush.bf16.msra.mxu0 0
        %1383 = vmatpush.bf16.msra.mxu0 %v1361
        %1384 = vmatpush.bf16.msra.mxu0 %v1360
        %1385 = vmatmul.bf16.gmra.mxu0 %v1366
        %v1386 = vpop.f32.mrf.mxu0
        %v1387 = vadd.f32 %v1338, %v1386
        %v1388 = vpop.f32.mrf.mxu0
        %v1389 = vadd.f32 %v1338, %v1388
        %1390 = vmatmul.bf16.gmra.mxu0 %v1369
        %v1391 = vpop.f32.mrf.mxu0
        %v1392 = vadd.f32 %v1338, %v1391
        %v1393 = vpop.f32.mrf.mxu0
        %v1394 = vadd.f32 %v1338, %v1393
        %1395 = vmatmul.bf16.gmra.mxu0 %v1372
        %v1396 = vpop.f32.mrf.mxu0
        %v1397 = vadd.f32 %v1338, %v1396
        %v1398 = vpop.f32.mrf.mxu0
        %v1399 = vadd.f32 %v1338, %v1398
        %1400 = vmatmul.bf16.gmra.mxu0 %v1375
        %v1401 = vpop.f32.mrf.mxu0
        %v1402 = vadd.f32 %v1338, %v1401
        %v1403 = vpop.f32.mrf.mxu0
        %v1404 = vadd.f32 %v1338, %v1403
        %1405 = vdwg.mxu0
        %v1406 = vxor.u32 %v1387, 2147483648
        %v1407 = vxor.u32 %v1389, 2147483648
        %v1408 = vxor.u32 %v1392, 2147483648
        %v1409 = vxor.u32 %v1394, 2147483648
        %v1410 = vxor.u32 %v1397, 2147483648
        %v1411 = vxor.u32 %v1399, 2147483648
        %v1412 = vxor.u32 %v1402, 2147483648
        %v1413 = vxor.u32 %v1404, 2147483648
        %v1414 = vmul.f32 %v1406, 1.442695
        %v1415 = vpow.pop %v1414
        %v1416 = vmul.f32 %v1407, 1.442695
        %v1417 = vpow.pop %v1416
        %v1418 = vmul.f32 %v1408, 1.442695
        %v1419 = vpow.pop %v1418
        %v1420 = vmul.f32 %v1409, 1.442695
        %v1421 = vpow.pop %v1420
        %v1422 = vmul.f32 %v1410, 1.442695
        %v1423 = vpow.pop %v1422
        %v1424 = vmul.f32 %v1411, 1.442695
        %v1425 = vpow.pop %v1424
        %v1426 = vmul.f32 %v1412, 1.442695
        %v1427 = vpow.pop %v1426
        %v1428 = vmul.f32 %v1413, 1.442695
        %v1429 = vpow.pop %v1428
        %v1430 = vadd.f32 %v1415, 1.0
        %v1431 = vadd.f32 %v1417, 1.0
        %v1432 = vadd.f32 %v1419, 1.0
        %v1433 = vadd.f32 %v1421, 1.0
        %v1434 = vadd.f32 %v1423, 1.0
        %v1435 = vadd.f32 %v1425, 1.0
        %v1436 = vadd.f32 %v1427, 1.0
        %v1437 = vadd.f32 %v1429, 1.0
        %v1438 = vrcp.pop %v1430
        %v1439 = vmul.f32 %v1430, %v1438
        %v1440 = vsub.f32 1.0, %v1439
        %v1441 = vmul.f32 %v1438, %v1440
        %v1442 = vadd.f32 %v1438, %v1441
        %vm1443 = vweird.f32 %v1430
        %vm1444 = vweird.f32 %v1438
        %vm1445 = vmor %vm1443, %vm1444
        %v1446 = vsel %vm1445, %v1438, %v1442
        %v1447 = vand.u32 2147483647, %v1430
        %vm1448 = vcmp.eq.f32.partialorder %v1447, 8.507059e+37
        %v1449 = vand.u32 %v1430, 2147483648
        %v1450 = vor.u32 1.1754944e-38, %v1449
        %v1451 = vsel %vm1448, %v1450, %v1446
        %v1452 = vmul.f32 1.0, %v1451
        %v1453 = vrcp.pop %v1431
        %v1454 = vmul.f32 %v1431, %v1453
        %v1455 = vsub.f32 1.0, %v1454
        %v1456 = vmul.f32 %v1453, %v1455
        %v1457 = vadd.f32 %v1453, %v1456
        %vm1458 = vweird.f32 %v1431
        %vm1459 = vweird.f32 %v1453
        %vm1460 = vmor %vm1458, %vm1459
        %v1461 = vsel %vm1460, %v1453, %v1457
        %v1462 = vand.u32 2147483647, %v1431
        %vm1463 = vcmp.eq.f32.partialorder %v1462, 8.507059e+37
        %v1464 = vand.u32 %v1431, 2147483648
        %v1465 = vor.u32 1.1754944e-38, %v1464
        %v1466 = vsel %vm1463, %v1465, %v1461
        %v1467 = vmul.f32 1.0, %v1466
        %v1468 = vrcp.pop %v1432
        %v1469 = vmul.f32 %v1432, %v1468
        %v1470 = vsub.f32 1.0, %v1469
        %v1471 = vmul.f32 %v1468, %v1470
        %v1472 = vadd.f32 %v1468, %v1471
        %vm1473 = vweird.f32 %v1432
        %vm1474 = vweird.f32 %v1468
        %vm1475 = vmor %vm1473, %vm1474
        %v1476 = vsel %vm1475, %v1468, %v1472
        %v1477 = vand.u32 2147483647, %v1432
        %vm1478 = vcmp.eq.f32.partialorder %v1477, 8.507059e+37
        %v1479 = vand.u32 %v1432, 2147483648
        %v1480 = vor.u32 1.1754944e-38, %v1479
        %v1481 = vsel %vm1478, %v1480, %v1476
        %v1482 = vmul.f32 1.0, %v1481
        %v1483 = vrcp.pop %v1433
        %v1484 = vmul.f32 %v1433, %v1483
        %v1485 = vsub.f32 1.0, %v1484
        %v1486 = vmul.f32 %v1483, %v1485
        %v1487 = vadd.f32 %v1483, %v1486
        %vm1488 = vweird.f32 %v1433
        %vm1489 = vweird.f32 %v1483
        %vm1490 = vmor %vm1488, %vm1489
        %v1491 = vsel %vm1490, %v1483, %v1487
        %v1492 = vand.u32 2147483647, %v1433
        %vm1493 = vcmp.eq.f32.partialorder %v1492, 8.507059e+37
        %v1494 = vand.u32 %v1433, 2147483648
        %v1495 = vor.u32 1.1754944e-38, %v1494
        %v1496 = vsel %vm1493, %v1495, %v1491
        %v1497 = vmul.f32 1.0, %v1496
        %v1498 = vrcp.pop %v1434
        %v1499 = vmul.f32 %v1434, %v1498
        %v1500 = vsub.f32 1.0, %v1499
        %v1501 = vmul.f32 %v1498, %v1500
        %v1502 = vadd.f32 %v1498, %v1501
        %vm1503 = vweird.f32 %v1434
        %vm1504 = vweird.f32 %v1498
        %vm1505 = vmor %vm1503, %vm1504
        %v1506 = vsel %vm1505, %v1498, %v1502
        %v1507 = vand.u32 2147483647, %v1434
        %vm1508 = vcmp.eq.f32.partialorder %v1507, 8.507059e+37
        %v1509 = vand.u32 %v1434, 2147483648
        %v1510 = vor.u32 1.1754944e-38, %v1509
        %v1511 = vsel %vm1508, %v1510, %v1506
        %v1512 = vmul.f32 1.0, %v1511
        %v1513 = vrcp.pop %v1435
        %v1514 = vmul.f32 %v1435, %v1513
        %v1515 = vsub.f32 1.0, %v1514
        %v1516 = vmul.f32 %v1513, %v1515
        %v1517 = vadd.f32 %v1513, %v1516
        %vm1518 = vweird.f32 %v1435
        %vm1519 = vweird.f32 %v1513
        %vm1520 = vmor %vm1518, %vm1519
        %v1521 = vsel %vm1520, %v1513, %v1517
        %v1522 = vand.u32 2147483647, %v1435
        %vm1523 = vcmp.eq.f32.partialorder %v1522, 8.507059e+37
        %v1524 = vand.u32 %v1435, 2147483648
        %v1525 = vor.u32 1.1754944e-38, %v1524
        %v1526 = vsel %vm1523, %v1525, %v1521
        %v1527 = vmul.f32 1.0, %v1526
        %v1528 = vrcp.pop %v1436
        %v1529 = vmul.f32 %v1436, %v1528
        %v1530 = vsub.f32 1.0, %v1529
        %v1531 = vmul.f32 %v1528, %v1530
        %v1532 = vadd.f32 %v1528, %v1531
        %vm1533 = vweird.f32 %v1436
        %vm1534 = vweird.f32 %v1528
        %vm1535 = vmor %vm1533, %vm1534
        %v1536 = vsel %vm1535, %v1528, %v1532
        %v1537 = vand.u32 2147483647, %v1436
        %vm1538 = vcmp.eq.f32.partialorder %v1537, 8.507059e+37
        %v1539 = vand.u32 %v1436, 2147483648
        %v1540 = vor.u32 1.1754944e-38, %v1539
        %v1541 = vsel %vm1538, %v1540, %v1536
        %v1542 = vmul.f32 1.0, %v1541
        %v1543 = vrcp.pop %v1437
        %v1544 = vmul.f32 %v1437, %v1543
        %v1545 = vsub.f32 1.0, %v1544
        %v1546 = vmul.f32 %v1543, %v1545
        %v1547 = vadd.f32 %v1543, %v1546
        %vm1548 = vweird.f32 %v1437
        %vm1549 = vweird.f32 %v1543
        %vm1550 = vmor %vm1548, %vm1549
        %v1551 = vsel %vm1550, %v1543, %v1547
        %v1552 = vand.u32 2147483647, %v1437
        %vm1553 = vcmp.eq.f32.partialorder %v1552, 8.507059e+37
        %v1554 = vand.u32 %v1437, 2147483648
        %v1555 = vor.u32 1.1754944e-38, %v1554
        %v1556 = vsel %vm1553, %v1555, %v1551
        %v1557 = vmul.f32 1.0, %v1556
        %v1558 = vtanh.pop %v1387
        %v1559 = vtanh.pop %v1389
        %v1560 = vtanh.pop %v1392
        %v1561 = vtanh.pop %v1394
        %v1562 = vtanh.pop %v1397
        %v1563 = vtanh.pop %v1399
        %v1564 = vtanh.pop %v1402
        %v1565 = vtanh.pop %v1404
        %v1566 = vmul.f32 %v1452, %v1558
        %v1567 = vmul.f32 %v1467, %v1559
        %v1568 = vmul.f32 %v1482, %v1560
        %v1569 = vmul.f32 %v1497, %v1561
        %v1570 = vmul.f32 %v1512, %v1562
        %v1571 = vmul.f32 %v1527, %v1563
        %v1572 = vmul.f32 %v1542, %v1564
        %v1573 = vmul.f32 %v1557, %v1565
        %v1574 = vsel %vm1364, %v1566, 0.0
        %v1575 = vrot.slane %v1574, 4
        %v1576 = vadd.f32 %v1574, %v1575
        %v1577 = vrot.slane %v1576, 2
        %v1578 = vadd.f32 %v1576, %v1577
        %v1579 = vrot.slane %v1578, 1
        %v1580 = vadd.f32 %v1578, %v1579
        %v1581 = vsel %vm1364, %v1567, 0.0
        %v1582 = vrot.slane %v1581, 4
        %v1583 = vadd.f32 %v1581, %v1582
        %v1584 = vrot.slane %v1583, 2
        %v1585 = vadd.f32 %v1583, %v1584
        %v1586 = vrot.slane %v1585, 1
        %v1587 = vadd.f32 %v1585, %v1586
        %v1588 = vsel %vm1364, %v1568, 0.0
        %v1589 = vrot.slane %v1588, 4
        %v1590 = vadd.f32 %v1588, %v1589
        %v1591 = vrot.slane %v1590, 2
        %v1592 = vadd.f32 %v1590, %v1591
        %v1593 = vrot.slane %v1592, 1
        %v1594 = vadd.f32 %v1592, %v1593
        %v1595 = vsel %vm1364, %v1569, 0.0
        %v1596 = vrot.slane %v1595, 4
        %v1597 = vadd.f32 %v1595, %v1596
        %v1598 = vrot.slane %v1597, 2
        %v1599 = vadd.f32 %v1597, %v1598
        %v1600 = vrot.slane %v1599, 1
        %v1601 = vadd.f32 %v1599, %v1600
        %v1602 = vsel %vm1364, %v1570, 0.0
        %v1603 = vrot.slane %v1602, 4
        %v1604 = vadd.f32 %v1602, %v1603
        %v1605 = vrot.slane %v1604, 2
        %v1606 = vadd.f32 %v1604, %v1605
        %v1607 = vrot.slane %v1606, 1
        %v1608 = vadd.f32 %v1606, %v1607
        %v1609 = vsel %vm1364, %v1571, 0.0
        %v1610 = vrot.slane %v1609, 4
        %v1611 = vadd.f32 %v1609, %v1610
        %v1612 = vrot.slane %v1611, 2
        %v1613 = vadd.f32 %v1611, %v1612
        %v1614 = vrot.slane %v1613, 1
        %v1615 = vadd.f32 %v1613, %v1614
        %v1616 = vsel %vm1364, %v1572, 0.0
        %v1617 = vrot.slane %v1616, 4
        %v1618 = vadd.f32 %v1616, %v1617
        %v1619 = vrot.slane %v1618, 2
        %v1620 = vadd.f32 %v1618, %v1619
        %v1621 = vrot.slane %v1620, 1
        %v1622 = vadd.f32 %v1620, %v1621
        %v1623 = vsel %vm1364, %v1573, 0.0
        %v1624 = vrot.slane %v1623, 4
        %v1625 = vadd.f32 %v1623, %v1624
        %v1626 = vrot.slane %v1625, 2
        %v1627 = vadd.f32 %v1625, %v1626
        %v1628 = vrot.slane %v1627, 1
        %v1629 = vadd.f32 %v1627, %v1628
        %v1630 = vtanh.pop %v1580
        %v1631 = vtanh.pop %v1587
        %v1632 = vtanh.pop %v1594
        %v1633 = vtanh.pop %v1601
        %v1634 = vtanh.pop %v1608
        %v1635 = vtanh.pop %v1615
        %v1636 = vtanh.pop %v1622
        %v1637 = vtanh.pop %v1629
        %v1638 = vpack.c.bf16 %v1630, %v1630
        %v1639 = vpack.c.bf16 %v1631, %v1631
        %v1640 = vpack.c.bf16 %v1632, %v1632
        %v1641 = vpack.c.bf16 %v1633, %v1633
        %v1642 = vpack.c.bf16 %v1634, %v1634
        %v1643 = vpack.c.bf16 %v1635, %v1635
        %v1644 = vpack.c.bf16 %v1636, %v1636
        %v1645 = vpack.c.bf16 %v1637, %v1637
        %v1647 = vperm.slane %v1333, 0
        %v1657 = vunpack.c.l.b16 %v1638
        %v1658 = vunpack.c.l.b16 %v1639
        %v1659 = vunpack.c.l.b16 %v1640
        %v1660 = vunpack.c.l.b16 %v1641
        %v1661 = vunpack.c.l.b16 %v1642
        %v1662 = vunpack.c.l.b16 %v1643
        %v1663 = vunpack.c.l.b16 %v1644
        %v1664 = vunpack.c.l.b16 %v1645
        %vm1665 = vcmask 1041409
        %v1666 = vsel %vm1665, %v1658, %v1657
        %vm1667 = vcmask 1042434
        %v1668 = vsel %vm1667, %v1659, %v1666
        %vm1669 = vcmask 1043459
        %v1670 = vsel %vm1669, %v1660, %v1668
        %vm1671 = vcmask 1044484
        %v1672 = vsel %vm1671, %v1661, %v1670
        %vm1673 = vcmask 1045509
        %v1674 = vsel %vm1673, %v1662, %v1672
        %vm1675 = vcmask 1046534
        %v1676 = vsel %vm1675, %v1663, %v1674
        %vm1677 = vcmask 1047559
        %v1678 = vsel %vm1677, %v1664, %v1676
        %v1679 = vpack.c.b16 %v1678, %v1678
        %v1684 = vunpack.c.l.b16 %v1329
        %v1685 = vunpack.c.l.b16 %v1330
        %v1686 = vunpack.c.l.b16 %v1331
        %v1687 = vunpack.c.l.b16 %v1332
        %v1688 = vpack.c.b16 %v1685, %v1684
        %v1689 = vpack.c.b16 %v1687, %v1686
        %v1693 = vsel %vm1364, %v1679, 0
        %1695 = vmatpush.bf16.msra.mxu0 0
        %1696 = vmatpush.bf16.msra.mxu0 0
        %1697 = vmatpush.bf16.msra.mxu0 0
        %1698 = vmatpush.bf16.msra.mxu0 0
        %1699 = vmatpush.bf16.msra.mxu0 0
        %1700 = vmatpush.bf16.msra.mxu0 0
        %1701 = vmatpush.bf16.msra.mxu0 %v1689
        %1702 = vmatpush.bf16.msra.mxu0 %v1688
        %1703 = vmatmul.bf16.gmra.mxu0 %v1693
        %v1704 = vpop.f32.mrf.mxu0
        %v1705 = vadd.f32 %v1647, %v1704
        %v1706 = vpop.f32.mrf.mxu0
        %1707 = vdwg.mxu0
        %v1708 = vtanh.pop %v1705
        %v1709 = vpack.c.bf16 %v1708, %v1708
        %v1711 = vperm.slane %v1336, 0
        %v1715 = vunpack.c.l.b16 %v1334
        %v1716 = vunpack.c.l.b16 %v1335
        %v1717 = vpack.c.b16 %v1716, %v1715
        %v1720 = vsel %vm743, %v1709, 0
        %1722 = vmatpush.bf16.msra.mxu0 0
        %1723 = vmatpush.bf16.msra.mxu0 0
        %1724 = vmatpush.bf16.msra.mxu0 0
        %1725 = vmatpush.bf16.msra.mxu0 0
        %1726 = vmatpush.bf16.msra.mxu0 0
        %1727 = vmatpush.bf16.msra.mxu0 0
        %1728 = vmatpush.bf16.msra.mxu0 0
        %1729 = vmatpush.bf16.msra.mxu0 %v1717
        %1730 = vmatmul.bf16.gmra.mxu0 %v1720
        %v1731 = vpop.f32.mrf.mxu0
        %v1732 = vadd.f32 %v1711, %v1731
        %v1733 = vpop.f32.mrf.mxu0
        %1734 = vdwg.mxu0
        %vm1735 = vcmask 7168
        %v1736 = vsel %vm1735, %v1732, 0.0
        %1737 = vst [vmem:[%s560] sm:$0xff] %v1736
        %p1738 = scmp.lt.s32.totalorder %s26, 1
        %s1739 = scalar_select %p1738, %s26, 1
        %s1740 = smul.addr %s1739, 8
        %s1741 = scalar_lea.vmem %s13, %s1740
        // Predicated region
        $region111: #{discriminator_forward.1} parent=105 // pred_check
          %p1742 = pneg %p327
        $region112: #{discriminator_forward.1} parent=105 // pred_check_branch
          %1744 = sbr.rel (%p1742) target = $region114
        $region113: #{discriminator_forward.1} parent=105 // pred_region
          _
        $region114: #{discriminator_forward.1} parent=105 // pred_fallthru
          _
      $region106: #{discriminator_forward.1} parent=5 // pred_fallthru
        _
      %p1745 = scmp.le.s32.totalorder 2, %s21
      // Predicated region
      $region115: #{discriminator_forward.1} parent=5 // pred_check
        %p1746 = pneg %p1745
      $region116: #{discriminator_forward.1} parent=5 // pred_check_branch
        %1748 = sbr.rel (%p1746) target = $region118
      $region117: #{discriminator_forward.1} parent=5 // pred_region
        %s1749 = ssub.s32 %s21, 2
        // Predicated region
        $region119: #{discriminator_forward.1} parent=117 // pred_check
          %p1750 = pneg %p333
        $region120: #{discriminator_forward.1} parent=117 // pred_check_branch
          %1752 = sbr.rel (%p1750) target = $region122
        $region121: #{discriminator_forward.1} parent=117 // pred_region
          %p1753 = scmp.lt.s32.totalorder %s27, 1
          %s1754 = scalar_select %p1753, %s27, 1
          %s1755 = smul.addr %s1754, 8
          %s1756 = scalar_lea.vmem %s13, %s1755
        $region122: #{discriminator_forward.1} parent=117 // pred_fallthru
          _
      $region118: #{discriminator_forward.1} parent=5 // pred_fallthru
        _
    $region6: #{discriminator_forward.1} parent=1 // loop_footer
      %s25 = sadd.s32 1, %s21
    $region7: #{discriminator_forward.1} parent=1 // loop_footer_branch
      %20 = sbr.rel target = $region3
    $region8: #{discriminator_forward.1} parent=1 // loop_exit
      _

</llo_original>
